<compile_context>
chip_gen: v6e
topology: v6e:2x2x1
jax: 0.10.0
libtpu: 0.0.40
codegen_flags: <defaults>
</compile_context>

<pallas_src>
import functools

import jax
import jax.numpy as jnp
from jax.experimental import pallas as pl
from jax.experimental.pallas import tpu as pltpu


def _round_up(x, m):
    return ((x + m - 1) // m) * m


# ----------------------------- Pallas kernels --------------------------------

def _conv_stats_kernel(w_ref, mask_ref, x_ref, y_ref, sum_ref, sq_ref, *, kh, kw, Wp):
    """One image per grid step: conv via lane-shifted taps + per-image BN partial sums.

    w_ref:    (kh*kw, C_out_p, C_in_p) bf16, constant index_map (fetched once)
    mask_ref: (1, Lp) f32   valid-output-lane mask on the flattened padded grid
    x_ref:    (1, C_in_p, Xlen) bf16  flattened zero-padded image
    y_ref:    (1, C_out_p, Lp) bf16   conv output (lane-dense, channel-major)
    sum_ref/sq_ref: (1, C_out_p, 1) f32  per-image BN partials (no cross-step accumulation)
    """
    Lp = mask_ref.shape[-1]
    c_out_p = w_ref.shape[1]
    xv = x_ref.at[0]                                    # Ref view of (C_in_p, Xlen); no load yet

    acc = jnp.zeros((c_out_p, Lp), jnp.float32)
    for i in range(kh):                                 # kh*kw static taps, accumulated on the MXU
        for j in range(kw):
            tap = xv[:, pl.ds(i * Wp + j, Lp)]          # (C_in_p, Lp) bf16, static lane shift
            acc = acc + jnp.dot(w_ref[i * kw + j], tap,
                                preferred_element_type=jnp.float32)

    m = mask_ref[...]                                   # (1, Lp): 1.0 on valid output positions
    ym = acc * m                                        # zero out wrap-around / padding lanes
    sum_ref[0] = jnp.sum(ym, axis=1, keepdims=True)     # (C_out_p, 1)
    sq_ref[0] = jnp.sum(ym * acc, axis=1, keepdims=True)
    y_ref[0] = acc.astype(y_ref.dtype)                  # bf16 intermediate (stats already in f32)


def _bn_apply_kernel(y_ref, scale_ref, shift_ref, o_ref):
    # y * scale + shift ; scale/shift are (C_out_p, 1) -> per-sublane broadcast over lanes.
    o_ref[0] = y_ref[0].astype(jnp.float32) * scale_ref[...] + shift_ref[...]


# ------------------------------- Wrapper --------------------------------------

def conv_bn_forward(x, w, gamma, beta, *, stride=1, pad=1, eps=1e-5):
    """x: (N, C_in, H, W) f32; w: (C_out, C_in, kh, kw); gamma/beta: (C_out,). Returns NCHW f32."""
    N, C_in, H, W = x.shape
    C_out, _, kh, kw = w.shape
    Hp, Wp = H + 2 * pad, W + 2 * pad
    H_out = (Hp - kh) // stride + 1
    W_out = (Wp - kw) // stride + 1
    # Stride-1 "full" conv grid on the padded image; a strided conv is a subsample of it.
    H_full, W_full = Hp - kh + 1, Wp - kw + 1

    C_in_p = _round_up(C_in, 8)                         # sublane granule
    C_out_p = _round_up(C_out, 8)
    Lp = _round_up(H_full * Wp, 128)                    # lane length of flattened conv output
    Xlen = _round_up((kh - 1) * Wp + (kw - 1) + Lp, 128)  # >= Hp*Wp, covers every tap window

    # ---- cheap host-side prep: pad + flatten (no K expansion) ----
    xp = jnp.pad(x, ((0, 0), (0, C_in_p - C_in), (pad, pad), (pad, pad)))
    xflat = jnp.pad(xp.reshape(N, C_in_p, Hp * Wp), ((0, 0), (0, 0), (0, Xlen - Hp * Wp)))
    xflat = xflat.astype(jnp.bfloat16)

    wp = jnp.pad(w, ((0, C_out_p - C_out), (0, C_in_p - C_in), (0, 0), (0, 0)))
    wt = jnp.transpose(wp, (2, 3, 0, 1)).reshape(kh * kw, C_out_p, C_in_p).astype(jnp.bfloat16)

    # Valid-output mask on the flattened padded grid: p = ho1*Wp + wo1, output rows/cols strided.
    p = jnp.arange(Lp)
    ho1, wo1 = p // Wp, p % Wp
    valid = ((ho1 % stride == 0) & (ho1 <= (H_out - 1) * stride)
             & (wo1 % stride == 0) & (wo1 <= (W_out - 1) * stride))
    mask = valid.astype(jnp.float32).reshape(1, Lp)

    # VMEM budgets (double-buffered streams + resident accumulator), capped safely for all gens.
    def _limit(nbytes):
        return int(min(max(4 * nbytes, 4 << 20), 32 << 20))

    conv_bytes = (kh * kw * C_out_p * C_in_p * 2 + Lp * 4
                  + 2 * C_in_p * Xlen * 2 + 2 * C_out_p * Lp * 2
                  + C_out_p * Lp * 4 + 4 * C_out_p * 4)
    bn_bytes = 2 * C_out_p * Lp * (2 + 4) + 2 * C_out_p * 8

    grid = (N,)

    # --- conv (in-kernel tap assembly) + per-image BN partial statistics ---
    y_bf, sum_p, sq_p = pl.pallas_call(
        functools.partial(_conv_stats_kernel, kh=kh, kw=kw, Wp=Wp),
        out_shape=(
            jax.ShapeDtypeStruct((N, C_out_p, Lp), jnp.bfloat16),
            jax.ShapeDtypeStruct((N, C_out_p, 1), jnp.float32),
            jax.ShapeDtypeStruct((N, C_out_p, 1), jnp.float32),
        ),
        grid=grid,
        in_specs=[
            pl.BlockSpec((kh * kw, C_out_p, C_in_p), lambda n: (0, 0, 0)),
            pl.BlockSpec((1, Lp), lambda n: (0, 0)),
            pl.BlockSpec((1, C_in_p, Xlen), lambda n: (n, 0, 0)),
        ],
        out_specs=(
            pl.BlockSpec((1, C_out_p, Lp), lambda n: (n, 0, 0)),
            pl.BlockSpec((1, C_out_p, 1), lambda n: (n, 0, 0)),
            pl.BlockSpec((1, C_out_p, 1), lambda n: (n, 0, 0)),
        ),
        compiler_params=pltpu.CompilerParams(
            dimension_semantics=("parallel",),          # per-image partials -> megacore-safe
            vmem_limit_bytes=_limit(conv_bytes),
        ),
    )(wt, mask, xflat)

    # --- tiny f32 epilogue: reduce partials, build the fused BN affine ---
    count = jnp.float32(N * H_out * W_out)
    mean = jnp.sum(sum_p, axis=0) / count               # (C_out_p, 1)
    var = jnp.sum(sq_p, axis=0) / count - mean * mean   # biased variance (PyTorch training BN)
    inv_std = jax.lax.rsqrt(var + eps)
    gamma_p = jnp.pad(gamma.astype(jnp.float32), (0, C_out_p - C_out),
                      constant_values=1.0).reshape(C_out_p, 1)
    beta_p = jnp.pad(beta.astype(jnp.float32), (0, C_out_p - C_out)).reshape(C_out_p, 1)
    scale = gamma_p * inv_std
    shift = beta_p - mean * scale

    # --- BatchNorm apply: elementwise affine, full-image lane-dense blocks ---
    out_flat = pl.pallas_call(
        _bn_apply_kernel,
        out_shape=jax.ShapeDtypeStruct((N, C_out_p, Lp), jnp.float32),
        grid=grid,
        in_specs=[
            pl.BlockSpec((1, C_out_p, Lp), lambda n: (n, 0, 0)),
            pl.BlockSpec((C_out_p, 1), lambda n: (0, 0)),   # constant blocks -> fetched once
            pl.BlockSpec((C_out_p, 1), lambda n: (0, 0)),
        ],
        out_specs=pl.BlockSpec((1, C_out_p, Lp), lambda n: (n, 0, 0)),
        compiler_params=pltpu.CompilerParams(
            dimension_semantics=("parallel",),
            vmem_limit_bytes=_limit(bn_bytes),
        ),
    )(y_bf, scale, shift)

    # Drop channel padding, fold the padded-flat axis back to (H_full, Wp), subsample by stride.
    full = out_flat[:, :C_out, :H_full * Wp].reshape(N, C_out, H_full, Wp)
    return full[:, :, ::stride, ::stride][:, :, :H_out, :W_out]


# ------------------------------ Reference -------------------------------------

def conv_bn_reference(x, w, gamma, beta, *, stride=1, pad=1, eps=1e-5):
    y = jax.lax.conv_general_dilated(
        x.astype(jnp.float32), w.astype(jnp.float32),
        window_strides=(stride, stride),
        padding=[(pad, pad), (pad, pad)],
        dimension_numbers=("NCHW", "OIHW", "NCHW"),
    )
    mean = y.mean(axis=(0, 2, 3), keepdims=True)
    var = y.var(axis=(0, 2, 3), keepdims=True)  # biased, matches BN normalization
    return (y - mean) / jnp.sqrt(var + eps) * gamma.reshape(1, -1, 1, 1) + beta.reshape(1, -1, 1, 1)


# --------------------------------- Main ----------------------------------------

if __name__ == "__main__":
    key = jax.random.PRNGKey(0)
    k_x, k_w, k_g, k_b = jax.random.split(key, 4)

    N, C_in, H, W = 2, 4, 16, 16
    C_out, ksz, stride, pad = 8, 3, 1, 1

    x = jax.random.normal(k_x, (N, C_in, H, W), dtype=jnp.float32)
    # Deterministic parameter init (shapes from the module's __init__):
    w = jax.random.normal(k_w, (C_out, C_in, ksz, ksz), dtype=jnp.float32) * 0.1
    gamma = 1.0 + 0.1 * jax.random.normal(k_g, (C_out,), dtype=jnp.float32)
    beta = 0.1 * jax.random.normal(k_b, (C_out,), dtype=jnp.float32)

    fwd = jax.jit(functools.partial(conv_bn_forward, stride=stride, pad=pad))
    out = jax.block_until_ready(fwd(x, w, gamma, beta))

    ref = conv_bn_reference(x, w, gamma, beta, stride=stride, pad=pad)
    assert out.shape == (N, C_out, H, W), out.shape
    # bf16 MXU operands + bf16 conv intermediate (f32 accumulation / f32 BN math):
    # tolerance relaxed vs the pure-f32 reference.
    err = float(jnp.max(jnp.abs(out - ref)))
    assert jnp.allclose(out, ref, rtol=3e-2, atol=3e-2), err

    print("KERNEL_OK")
</pallas_src>

<mosaic_0001>
module attributes {stable_mosaic.version = 11 : i64} {
  func.func @_conv_stats_kernel(%arg0: i32, %arg1: memref<9x8x8xbf16, #tpu.memory_space<vmem>>, %arg2: memref<1x384xf32, #tpu.memory_space<vmem>>, %arg3: memref<1x8x512xbf16, #tpu.memory_space<vmem>>, %arg4: memref<1x8x384xbf16, #tpu.memory_space<vmem>>, %arg5: memref<1x8x1xf32, #tpu.memory_space<vmem>>, %arg6: memref<1x8x1xf32, #tpu.memory_space<vmem>>) attributes {dimension_semantics = [#tpu.dimension_semantics<parallel>], iteration_bounds = array<i64: 2>, scalar_prefetch = 0 : i64, scratch_operands = 0 : i64, tpu.core_type = #tpu.core_type<tc>, window_params = [{pipeline_mode = #tpu.pipeline_mode<synchronous>, transform_indices = @transform_0, window_bounds = array<i64: 9, 8, 8>}, {pipeline_mode = #tpu.pipeline_mode<synchronous>, transform_indices = @transform_1, window_bounds = array<i64: 1, 384>}, {transform_indices = @transform_2, window_bounds = array<i64: 1, 8, 512>}, {transform_indices = @transform_3, window_bounds = array<i64: 1, 8, 384>}, {transform_indices = @transform_4, window_bounds = array<i64: 1, 8, 1>}, {transform_indices = @transform_5, window_bounds = array<i64: 1, 8, 1>}]} {
    %cst = arith.constant 0.000000e+00 : f32
    %0 = vector.broadcast %cst : f32 to vector<8x384xf32>
    %c0_i32 = arith.constant 0 : i32
    %c0_i32_0 = arith.constant 0 : i32
    %c0_i32_1 = arith.constant 0 : i32
    %1 = tpu.memref_slice %arg3[%c0_i32, %c0_i32_0, %c0_i32_1] : memref<1x8x512xbf16, #tpu.memory_space<vmem>> -> memref<1x8x512xbf16, #tpu.memory_space<vmem>>
    %2 = tpu.memref_squeeze %1 : memref<1x8x512xbf16, #tpu.memory_space<vmem>> -> memref<8x512xbf16, #tpu.memory_space<vmem>>
    %c0 = arith.constant 0 : index
    %c0_2 = arith.constant 0 : index
    %3 = vector.load %2[%c0, %c0_2] : memref<8x512xbf16, #tpu.memory_space<vmem>>, vector<8x384xbf16>
    %c0_3 = arith.constant 0 : index
    %c0_4 = arith.constant 0 : index
    %c0_5 = arith.constant 0 : index
    %4 = vector.load %arg1[%c0_3, %c0_4, %c0_5] : memref<9x8x8xbf16, #tpu.memory_space<vmem>>, vector<1x8x8xbf16>
    %5 = vector.shape_cast %4 : vector<1x8x8xbf16> to vector<8x8xbf16>
    %cst_6 = arith.constant dense<0.000000e+00> : vector<8x384xf32>
    %6 = tpu.matmul %5, %3, %cst_6 {dimension_numbers = #tpu.dot_dimension_numbers<[1], [0], [0], [1], [0, 0, 1, 1], [], []>} : vector<8x8xbf16>, vector<8x384xbf16>, vector<8x384xf32> -> vector<8x384xf32>
    %7 = arith.addf %0, %6 : vector<8x384xf32>
    %c0_i32_7 = arith.constant 0 : i32
    %c0_i32_8 = arith.constant 0 : i32
    %c0_i32_9 = arith.constant 0 : i32
    %8 = tpu.memref_slice %arg3[%c0_i32_7, %c0_i32_8, %c0_i32_9] : memref<1x8x512xbf16, #tpu.memory_space<vmem>> -> memref<1x8x512xbf16, #tpu.memory_space<vmem>>
    %9 = tpu.memref_squeeze %8 : memref<1x8x512xbf16, #tpu.memory_space<vmem>> -> memref<8x512xbf16, #tpu.memory_space<vmem>>
    %c0_10 = arith.constant 0 : index
    %c1 = arith.constant 1 : index
    %10 = vector.load %9[%c0_10, %c1] : memref<8x512xbf16, #tpu.memory_space<vmem>>, vector<8x384xbf16>
    %c1_11 = arith.constant 1 : index
    %c0_12 = arith.constant 0 : index
    %c0_13 = arith.constant 0 : index
    %11 = vector.load %arg1[%c1_11, %c0_12, %c0_13] : memref<9x8x8xbf16, #tpu.memory_space<vmem>>, vector<1x8x8xbf16>
    %12 = vector.shape_cast %11 : vector<1x8x8xbf16> to vector<8x8xbf16>
    %cst_14 = arith.constant dense<0.000000e+00> : vector<8x384xf32>
    %13 = tpu.matmul %12, %10, %cst_14 {dimension_numbers = #tpu.dot_dimension_numbers<[1], [0], [0], [1], [0, 0, 1, 1], [], []>} : vector<8x8xbf16>, vector<8x384xbf16>, vector<8x384xf32> -> vector<8x384xf32>
    %14 = arith.addf %7, %13 : vector<8x384xf32>
    %c0_i32_15 = arith.constant 0 : i32
    %c0_i32_16 = arith.constant 0 : i32
    %c0_i32_17 = arith.constant 0 : i32
    %15 = tpu.memref_slice %arg3[%c0_i32_15, %c0_i32_16, %c0_i32_17] : memref<1x8x512xbf16, #tpu.memory_space<vmem>> -> memref<1x8x512xbf16, #tpu.memory_space<vmem>>
    %16 = tpu.memref_squeeze %15 : memref<1x8x512xbf16, #tpu.memory_space<vmem>> -> memref<8x512xbf16, #tpu.memory_space<vmem>>
    %c0_18 = arith.constant 0 : index
    %c2 = arith.constant 2 : index
    %17 = vector.load %16[%c0_18, %c2] : memref<8x512xbf16, #tpu.memory_space<vmem>>, vector<8x384xbf16>
    %c2_19 = arith.constant 2 : index
    %c0_20 = arith.constant 0 : index
    %c0_21 = arith.constant 0 : index
    %18 = vector.load %arg1[%c2_19, %c0_20, %c0_21] : memref<9x8x8xbf16, #tpu.memory_space<vmem>>, vector<1x8x8xbf16>
    %19 = vector.shape_cast %18 : vector<1x8x8xbf16> to vector<8x8xbf16>
    %cst_22 = arith.constant dense<0.000000e+00> : vector<8x384xf32>
    %20 = tpu.matmul %19, %17, %cst_22 {dimension_numbers = #tpu.dot_dimension_numbers<[1], [0], [0], [1], [0, 0, 1, 1], [], []>} : vector<8x8xbf16>, vector<8x384xbf16>, vector<8x384xf32> -> vector<8x384xf32>
    %21 = arith.addf %14, %20 : vector<8x384xf32>
    %c0_i32_23 = arith.constant 0 : i32
    %c0_i32_24 = arith.constant 0 : i32
    %c0_i32_25 = arith.constant 0 : i32
    %22 = tpu.memref_slice %arg3[%c0_i32_23, %c0_i32_24, %c0_i32_25] : memref<1x8x512xbf16, #tpu.memory_space<vmem>> -> memref<1x8x512xbf16, #tpu.memory_space<vmem>>
    %23 = tpu.memref_squeeze %22 : memref<1x8x512xbf16, #tpu.memory_space<vmem>> -> memref<8x512xbf16, #tpu.memory_space<vmem>>
    %c0_26 = arith.constant 0 : index
    %c18 = arith.constant 18 : index
    %24 = vector.load %23[%c0_26, %c18] : memref<8x512xbf16, #tpu.memory_space<vmem>>, vector<8x384xbf16>
    %c3 = arith.constant 3 : index
    %c0_27 = arith.constant 0 : index
    %c0_28 = arith.constant 0 : index
    %25 = vector.load %arg1[%c3, %c0_27, %c0_28] : memref<9x8x8xbf16, #tpu.memory_space<vmem>>, vector<1x8x8xbf16>
    %26 = vector.shape_cast %25 : vector<1x8x8xbf16> to vector<8x8xbf16>
    %cst_29 = arith.constant dense<0.000000e+00> : vector<8x384xf32>
    %27 = tpu.matmul %26, %24, %cst_29 {dimension_numbers = #tpu.dot_dimension_numbers<[1], [0], [0], [1], [0, 0, 1, 1], [], []>} : vector<8x8xbf16>, vector<8x384xbf16>, vector<8x384xf32> -> vector<8x384xf32>
    %28 = arith.addf %21, %27 : vector<8x384xf32>
    %c0_i32_30 = arith.constant 0 : i32
    %c0_i32_31 = arith.constant 0 : i32
    %c0_i32_32 = arith.constant 0 : i32
    %29 = tpu.memref_slice %arg3[%c0_i32_30, %c0_i32_31, %c0_i32_32] : memref<1x8x512xbf16, #tpu.memory_space<vmem>> -> memref<1x8x512xbf16, #tpu.memory_space<vmem>>
    %30 = tpu.memref_squeeze %29 : memref<1x8x512xbf16, #tpu.memory_space<vmem>> -> memref<8x512xbf16, #tpu.memory_space<vmem>>
    %c0_33 = arith.constant 0 : index
    %c19 = arith.constant 19 : index
    %31 = vector.load %30[%c0_33, %c19] : memref<8x512xbf16, #tpu.memory_space<vmem>>, vector<8x384xbf16>
    %c4 = arith.constant 4 : index
    %c0_34 = arith.constant 0 : index
    %c0_35 = arith.constant 0 : index
    %32 = vector.load %arg1[%c4, %c0_34, %c0_35] : memref<9x8x8xbf16, #tpu.memory_space<vmem>>, vector<1x8x8xbf16>
    %33 = vector.shape_cast %32 : vector<1x8x8xbf16> to vector<8x8xbf16>
    %cst_36 = arith.constant dense<0.000000e+00> : vector<8x384xf32>
    %34 = tpu.matmul %33, %31, %cst_36 {dimension_numbers = #tpu.dot_dimension_numbers<[1], [0], [0], [1], [0, 0, 1, 1], [], []>} : vector<8x8xbf16>, vector<8x384xbf16>, vector<8x384xf32> -> vector<8x384xf32>
    %35 = arith.addf %28, %34 : vector<8x384xf32>
    %c0_i32_37 = arith.constant 0 : i32
    %c0_i32_38 = arith.constant 0 : i32
    %c0_i32_39 = arith.constant 0 : i32
    %36 = tpu.memref_slice %arg3[%c0_i32_37, %c0_i32_38, %c0_i32_39] : memref<1x8x512xbf16, #tpu.memory_space<vmem>> -> memref<1x8x512xbf16, #tpu.memory_space<vmem>>
    %37 = tpu.memref_squeeze %36 : memref<1x8x512xbf16, #tpu.memory_space<vmem>> -> memref<8x512xbf16, #tpu.memory_space<vmem>>
    %c0_40 = arith.constant 0 : index
    %c20 = arith.constant 20 : index
    %38 = vector.load %37[%c0_40, %c20] : memref<8x512xbf16, #tpu.memory_space<vmem>>, vector<8x384xbf16>
    %c5 = arith.constant 5 : index
    %c0_41 = arith.constant 0 : index
    %c0_42 = arith.constant 0 : index
    %39 = vector.load %arg1[%c5, %c0_41, %c0_42] : memref<9x8x8xbf16, #tpu.memory_space<vmem>>, vector<1x8x8xbf16>
    %40 = vector.shape_cast %39 : vector<1x8x8xbf16> to vector<8x8xbf16>
    %cst_43 = arith.constant dense<0.000000e+00> : vector<8x384xf32>
    %41 = tpu.matmul %40, %38, %cst_43 {dimension_numbers = #tpu.dot_dimension_numbers<[1], [0], [0], [1], [0, 0, 1, 1], [], []>} : vector<8x8xbf16>, vector<8x384xbf16>, vector<8x384xf32> -> vector<8x384xf32>
    %42 = arith.addf %35, %41 : vector<8x384xf32>
    %c0_i32_44 = arith.constant 0 : i32
    %c0_i32_45 = arith.constant 0 : i32
    %c0_i32_46 = arith.constant 0 : i32
    %43 = tpu.memref_slice %arg3[%c0_i32_44, %c0_i32_45, %c0_i32_46] : memref<1x8x512xbf16, #tpu.memory_space<vmem>> -> memref<1x8x512xbf16, #tpu.memory_space<vmem>>
    %44 = tpu.memref_squeeze %43 : memref<1x8x512xbf16, #tpu.memory_space<vmem>> -> memref<8x512xbf16, #tpu.memory_space<vmem>>
    %c0_47 = arith.constant 0 : index
    %c36 = arith.constant 36 : index
    %45 = vector.load %44[%c0_47, %c36] : memref<8x512xbf16, #tpu.memory_space<vmem>>, vector<8x384xbf16>
    %c6 = arith.constant 6 : index
    %c0_48 = arith.constant 0 : index
    %c0_49 = arith.constant 0 : index
    %46 = vector.load %arg1[%c6, %c0_48, %c0_49] : memref<9x8x8xbf16, #tpu.memory_space<vmem>>, vector<1x8x8xbf16>
    %47 = vector.shape_cast %46 : vector<1x8x8xbf16> to vector<8x8xbf16>
    %cst_50 = arith.constant dense<0.000000e+00> : vector<8x384xf32>
    %48 = tpu.matmul %47, %45, %cst_50 {dimension_numbers = #tpu.dot_dimension_numbers<[1], [0], [0], [1], [0, 0, 1, 1], [], []>} : vector<8x8xbf16>, vector<8x384xbf16>, vector<8x384xf32> -> vector<8x384xf32>
    %49 = arith.addf %42, %48 : vector<8x384xf32>
    %c0_i32_51 = arith.constant 0 : i32
    %c0_i32_52 = arith.constant 0 : i32
    %c0_i32_53 = arith.constant 0 : i32
    %50 = tpu.memref_slice %arg3[%c0_i32_51, %c0_i32_52, %c0_i32_53] : memref<1x8x512xbf16, #tpu.memory_space<vmem>> -> memref<1x8x512xbf16, #tpu.memory_space<vmem>>
    %51 = tpu.memref_squeeze %50 : memref<1x8x512xbf16, #tpu.memory_space<vmem>> -> memref<8x512xbf16, #tpu.memory_space<vmem>>
    %c0_54 = arith.constant 0 : index
    %c37 = arith.constant 37 : index
    %52 = vector.load %51[%c0_54, %c37] : memref<8x512xbf16, #tpu.memory_space<vmem>>, vector<8x384xbf16>
    %c7 = arith.constant 7 : index
    %c0_55 = arith.constant 0 : index
    %c0_56 = arith.constant 0 : index
    %53 = vector.load %arg1[%c7, %c0_55, %c0_56] : memref<9x8x8xbf16, #tpu.memory_space<vmem>>, vector<1x8x8xbf16>
    %54 = vector.shape_cast %53 : vector<1x8x8xbf16> to vector<8x8xbf16>
    %cst_57 = arith.constant dense<0.000000e+00> : vector<8x384xf32>
    %55 = tpu.matmul %54, %52, %cst_57 {dimension_numbers = #tpu.dot_dimension_numbers<[1], [0], [0], [1], [0, 0, 1, 1], [], []>} : vector<8x8xbf16>, vector<8x384xbf16>, vector<8x384xf32> -> vector<8x384xf32>
    %56 = arith.addf %49, %55 : vector<8x384xf32>
    %c0_i32_58 = arith.constant 0 : i32
    %c0_i32_59 = arith.constant 0 : i32
    %c0_i32_60 = arith.constant 0 : i32
    %57 = tpu.memref_slice %arg3[%c0_i32_58, %c0_i32_59, %c0_i32_60] : memref<1x8x512xbf16, #tpu.memory_space<vmem>> -> memref<1x8x512xbf16, #tpu.memory_space<vmem>>
    %58 = tpu.memref_squeeze %57 : memref<1x8x512xbf16, #tpu.memory_space<vmem>> -> memref<8x512xbf16, #tpu.memory_space<vmem>>
    %c0_61 = arith.constant 0 : index
    %c38 = arith.constant 38 : index
    %59 = vector.load %58[%c0_61, %c38] : memref<8x512xbf16, #tpu.memory_space<vmem>>, vector<8x384xbf16>
    %c8 = arith.constant 8 : index
    %c0_62 = arith.constant 0 : index
    %c0_63 = arith.constant 0 : index
    %60 = vector.load %arg1[%c8, %c0_62, %c0_63] : memref<9x8x8xbf16, #tpu.memory_space<vmem>>, vector<1x8x8xbf16>
    %61 = vector.shape_cast %60 : vector<1x8x8xbf16> to vector<8x8xbf16>
    %cst_64 = arith.constant dense<0.000000e+00> : vector<8x384xf32>
    %62 = tpu.matmul %61, %59, %cst_64 {dimension_numbers = #tpu.dot_dimension_numbers<[1], [0], [0], [1], [0, 0, 1, 1], [], []>} : vector<8x8xbf16>, vector<8x384xbf16>, vector<8x384xf32> -> vector<8x384xf32>
    %63 = arith.addf %56, %62 : vector<8x384xf32>
    %c0_65 = arith.constant 0 : index
    %c0_66 = arith.constant 0 : index
    %64 = vector.load %arg2[%c0_65, %c0_66] : memref<1x384xf32, #tpu.memory_space<vmem>>, vector<1x384xf32>
    %65 = vector.broadcast %64 : vector<1x384xf32> to vector<8x384xf32>
    %66 = arith.mulf %63, %65 : vector<8x384xf32>
    %cst_67 = arith.constant dense<0.000000e+00> : vector<8xf32>
    %67 = vector.multi_reduction <add>, %66, %cst_67 [1] : vector<8x384xf32> to vector<8xf32>
    %68 = vector.shape_cast %67 : vector<8xf32> to vector<8x1xf32>
    %c0_68 = arith.constant 0 : index
    %c0_69 = arith.constant 0 : index
    %c0_70 = arith.constant 0 : index
    %69 = vector.load %arg5[%c0_68, %c0_69, %c0_70] : memref<1x8x1xf32, #tpu.memory_space<vmem>>, vector<1x8x1xf32>
    %70 = vector.shape_cast %69 : vector<1x8x1xf32> to vector<8x1xf32>
    %71 = vector.shape_cast %68 : vector<8x1xf32> to vector<1x8x1xf32>
    tpu.vector_store %arg5[%c0_68, %c0_69, %c0_70], %71 {strides = array<i32>} : memref<1x8x1xf32, #tpu.memory_space<vmem>>, vector<1x8x1xf32>,
    %72 = arith.mulf %66, %63 : vector<8x384xf32>
    %cst_71 = arith.constant dense<0.000000e+00> : vector<8xf32>
    %73 = vector.multi_reduction <add>, %72, %cst_71 [1] : vector<8x384xf32> to vector<8xf32>
    %74 = vector.shape_cast %73 : vector<8xf32> to vector<8x1xf32>
    %c0_72 = arith.constant 0 : index
    %c0_73 = arith.constant 0 : index
    %c0_74 = arith.constant 0 : index
    %75 = vector.load %arg6[%c0_72, %c0_73, %c0_74] : memref<1x8x1xf32, #tpu.memory_space<vmem>>, vector<1x8x1xf32>
    %76 = vector.shape_cast %75 : vector<1x8x1xf32> to vector<8x1xf32>
    %77 = vector.shape_cast %74 : vector<8x1xf32> to vector<1x8x1xf32>
    tpu.vector_store %arg6[%c0_72, %c0_73, %c0_74], %77 {strides = array<i32>} : memref<1x8x1xf32, #tpu.memory_space<vmem>>, vector<1x8x1xf32>,
    %78 = arith.truncf %63 : vector<8x384xf32> to vector<8x384xbf16>
    %c0_75 = arith.constant 0 : index
    %c0_76 = arith.constant 0 : index
    %c0_77 = arith.constant 0 : index
    %79 = vector.load %arg4[%c0_75, %c0_76, %c0_77] : memref<1x8x384xbf16, #tpu.memory_space<vmem>>, vector<1x8x384xbf16>
    %80 = vector.shape_cast %79 : vector<1x8x384xbf16> to vector<8x384xbf16>
    %81 = vector.shape_cast %78 : vector<8x384xbf16> to vector<1x8x384xbf16>
    tpu.vector_store %arg4[%c0_75, %c0_76, %c0_77], %81 {strides = array<i32>} : memref<1x8x384xbf16, #tpu.memory_space<vmem>>, vector<1x8x384xbf16>,
    return
  }
  func.func @transform_0(%arg0: i32) -> (i32, i32, i32) {
    %c0_i32 = arith.constant 0 : i32
    %c0_i32_0 = arith.constant 0 : i32
    %c0_i32_1 = arith.constant 0 : i32
    %c0_i32_2 = arith.constant 0 : i32
    return %c0_i32, %c0_i32_0, %c0_i32_1 : i32, i32, i32
  }
  func.func @transform_1(%arg0: i32) -> (i32, i32) {
    %c0_i32 = arith.constant 0 : i32
    %c0_i32_0 = arith.constant 0 : i32
    %c0_i32_1 = arith.constant 0 : i32
    return %c0_i32, %c0_i32_0 : i32, i32
  }
  func.func @transform_2(%arg0: i32) -> (i32, i32, i32) {
    %c0_i32 = arith.constant 0 : i32
    %c0_i32_0 = arith.constant 0 : i32
    %c0_i32_1 = arith.constant 0 : i32
    return %arg0, %c0_i32, %c0_i32_0 : i32, i32, i32
  }
  func.func @transform_3(%arg0: i32) -> (i32, i32, i32) {
    %c0_i32 = arith.constant 0 : i32
    %c0_i32_0 = arith.constant 0 : i32
    %c0_i32_1 = arith.constant 0 : i32
    return %arg0, %c0_i32, %c0_i32_0 : i32, i32, i32
  }
  func.func @transform_4(%arg0: i32) -> (i32, i32, i32) {
    %c0_i32 = arith.constant 0 : i32
    %c0_i32_0 = arith.constant 0 : i32
    %c0_i32_1 = arith.constant 0 : i32
    return %arg0, %c0_i32, %c0_i32_0 : i32, i32, i32
  }
  func.func @transform_5(%arg0: i32) -> (i32, i32, i32) {
    %c0_i32 = arith.constant 0 : i32
    %c0_i32_0 = arith.constant 0 : i32
    %c0_i32_1 = arith.constant 0 : i32
    return %arg0, %c0_i32, %c0_i32_0 : i32, i32, i32
  }
}

module attributes {stable_mosaic.version = 11 : i64} {
  func.func @_bn_apply_kernel(%arg0: i32, %arg1: memref<1x8x384xbf16, #tpu.memory_space<vmem>>, %arg2: memref<8x1xf32, #tpu.memory_space<vmem>>, %arg3: memref<8x1xf32, #tpu.memory_space<vmem>>, %arg4: memref<1x8x384xf32, #tpu.memory_space<vmem>>) attributes {dimension_semantics = [#tpu.dimension_semantics<parallel>], iteration_bounds = array<i64: 2>, scalar_prefetch = 0 : i64, scratch_operands = 0 : i64, tpu.core_type = #tpu.core_type<tc>, window_params = [{transform_indices = @transform_0, window_bounds = array<i64: 1, 8, 384>}, {pipeline_mode = #tpu.pipeline_mode<synchronous>, transform_indices = @transform_1, window_bounds = array<i64: 8, 1>}, {pipeline_mode = #tpu.pipeline_mode<synchronous>, transform_indices = @transform_2, window_bounds = array<i64: 8, 1>}, {transform_indices = @transform_3, window_bounds = array<i64: 1, 8, 384>}]} {
    %c0 = arith.constant 0 : index
    %c0_0 = arith.constant 0 : index
    %c0_1 = arith.constant 0 : index
    %0 = vector.load %arg1[%c0, %c0_0, %c0_1] : memref<1x8x384xbf16, #tpu.memory_space<vmem>>, vector<1x8x384xbf16>
    %1 = vector.shape_cast %0 : vector<1x8x384xbf16> to vector<8x384xbf16>
    %2 = arith.extf %1 : vector<8x384xbf16> to vector<8x384xf32>
    %c0_2 = arith.constant 0 : index
    %c0_3 = arith.constant 0 : index
    %3 = vector.load %arg2[%c0_2, %c0_3] : memref<8x1xf32, #tpu.memory_space<vmem>>, vector<8x1xf32>
    %4 = vector.broadcast %3 : vector<8x1xf32> to vector<8x384xf32>
    %5 = arith.mulf %2, %4 : vector<8x384xf32>
    %c0_4 = arith.constant 0 : index
    %c0_5 = arith.constant 0 : index
    %6 = vector.load %arg3[%c0_4, %c0_5] : memref<8x1xf32, #tpu.memory_space<vmem>>, vector<8x1xf32>
    %7 = vector.broadcast %6 : vector<8x1xf32> to vector<8x384xf32>
    %8 = arith.addf %5, %7 : vector<8x384xf32>
    %c0_6 = arith.constant 0 : index
    %c0_7 = arith.constant 0 : index
    %c0_8 = arith.constant 0 : index
    %9 = vector.load %arg4[%c0_6, %c0_7, %c0_8] : memref<1x8x384xf32, #tpu.memory_space<vmem>>, vector<1x8x384xf32>
    %10 = vector.shape_cast %9 : vector<1x8x384xf32> to vector<8x384xf32>
    %11 = vector.shape_cast %8 : vector<8x384xf32> to vector<1x8x384xf32>
    tpu.vector_store %arg4[%c0_6, %c0_7, %c0_8], %11 {strides = array<i32>} : memref<1x8x384xf32, #tpu.memory_space<vmem>>, vector<1x8x384xf32>,
    return
  }
  func.func @transform_0(%arg0: i32) -> (i32, i32, i32) {
    %c0_i32 = arith.constant 0 : i32
    %c0_i32_0 = arith.constant 0 : i32
    %c0_i32_1 = arith.constant 0 : i32
    return %arg0, %c0_i32, %c0_i32_0 : i32, i32, i32
  }
  func.func @transform_1(%arg0: i32) -> (i32, i32) {
    %c0_i32 = arith.constant 0 : i32
    %c0_i32_0 = arith.constant 0 : i32
    %c0_i32_1 = arith.constant 0 : i32
    return %c0_i32, %c0_i32_0 : i32, i32
  }
  func.func @transform_2(%arg0: i32) -> (i32, i32) {
    %c0_i32 = arith.constant 0 : i32
    %c0_i32_0 = arith.constant 0 : i32
    %c0_i32_1 = arith.constant 0 : i32
    return %c0_i32, %c0_i32_0 : i32, i32
  }
  func.func @transform_3(%arg0: i32) -> (i32, i32, i32) {
    %c0_i32 = arith.constant 0 : i32
    %c0_i32_0 = arith.constant 0 : i32
    %c0_i32_1 = arith.constant 0 : i32
    return %arg0, %c0_i32, %c0_i32_0 : i32, i32, i32
  }
}

</mosaic_0001>

<llo_original>
// kernel: conv_bn_forward.3
$region0: #{conv_bn_forward.3}
  #allocation0 [shape = 'u32[]', space=smem, size = 0x4, offset = 0x4, fixed_abs, tag = 'smem constant byte address 0x4 - core index']
  #allocation1 [shape = 'u32[144,128]{1,0:T(1,128)}', space=vmem, size = 0x12000, scoped, tag = 'internal scratch']
  %s0 = inlined_call_operand.vmem [shape: bf16[2,8,384], index: 0, kind: input, shape index: {}]
  %s1 = inlined_call_operand.vmem [shape: f32[8,1], index: 1, kind: input, shape index: {}]
  %s2 = inlined_call_operand.vmem [shape: f32[8,1], index: 2, kind: input, shape index: {}]
  %s3 = inlined_call_operand.vmem [shape: f32[2,8,384], index: 3, kind: output, shape index: {}]
  %s4 = sld [smem:[#allocation0]]
  $region45: #{conv_bn_forward.3} parent=0
    _
  %s6 = ssub.s32 1, %s4
  %s7 = scalar_select 0, %s6, %s4
  loop: start=0, step=1, limit=4
  $region2: #{conv_bn_forward.3} parent=0 // loop_pre_header
    _
  $region3: #{conv_bn_forward.3} parent=0 // loop_header
    %s9 = sphi 0, %s13
    %p10 = scmp.ge.s32.totalorder %s9, 4
    %s19 = sphi 0, %s21
    %s22 = sphi 0, %s19
    %s23 = sphi 0, %s22
    %s39 = sphi 0, %s23
    %s43 = sphi 0, %s43
    %s45 = sphi 0, %s43
    %s46 = sphi 0, %s45
    %s60 = sphi 0, %s46
    %s64 = sphi 0, %s64
    %s66 = sphi 0, %s64
    %s67 = sphi 0, %s66
    %s81 = sphi 0, %s67
    %s87 = sphi 0, %s89
    %s90 = sphi 0, %s87
    %s91 = sphi 0, %s90
    %s107 = sphi 0, %s91
  $region4: #{conv_bn_forward.3} parent=0 // loop_header_branch
    %12 = sbr.rel (%p10) target = $region8
  $region5: #{conv_bn_forward.3} parent=0 // loop_body
    %s14 = ssub.s32 %s9, 1
    %s15 = ssub.s32 %s9, 2
    %s16 = sadd.s32 %s9, 1
    %s17 = ssub.s32 %s9, %s16
    %p18 = scmp.eq.s32.totalorder %s17, 0
    %s20 = sadd.s32 %s19, 1
    %s21 = scalar_select %p18, %s19, %s20
    %p24 = pneg %p18
    %p25 = scmp.eq.s32.totalorder %s9, 1
    %p26 = por %p24, %p25
    %p27 = scmp.ne.s32.totalorder %s19, %s22
    %p28 = scmp.eq.s32.totalorder %s9, 0
    %p29 = por %p27, %p28
    %p30 = scmp.ne.s32.totalorder %s19, %s22
    %p31 = scmp.eq.s32.totalorder %s14, 1
    %p32 = por %p30, %p31
    %p33 = scmp.ne.s32.totalorder %s22, %s23
    %p34 = scmp.eq.s32.totalorder %s14, 0
    %p35 = por %p33, %p34
    %p36 = scmp.ne.s32.totalorder %s22, %s23
    %p37 = scmp.eq.s32.totalorder %s15, 1
    %p38 = por %p36, %p37
    %p40 = scmp.ne.s32.totalorder %s23, %s39
    %p41 = scmp.eq.s32.totalorder %s15, 0
    %p42 = por %p40, %p41
    %s44 = sadd.s32 %s43, 1
    %p47 = scmp.eq.s32.totalorder %s9, 1
    %p48 = scmp.ne.s32.totalorder %s43, %s45
    %p49 = scmp.eq.s32.totalorder %s9, 0
    %p50 = por %p48, %p49
    %p51 = scmp.ne.s32.totalorder %s43, %s45
    %p52 = scmp.eq.s32.totalorder %s14, 1
    %p53 = por %p51, %p52
    %p54 = scmp.ne.s32.totalorder %s45, %s46
    %p55 = scmp.eq.s32.totalorder %s14, 0
    %p56 = por %p54, %p55
    %p57 = scmp.ne.s32.totalorder %s45, %s46
    %p58 = scmp.eq.s32.totalorder %s15, 1
    %p59 = por %p57, %p58
    %p61 = scmp.ne.s32.totalorder %s46, %s60
    %p62 = scmp.eq.s32.totalorder %s15, 0
    %p63 = por %p61, %p62
    %s65 = sadd.s32 %s64, 1
    %p68 = scmp.eq.s32.totalorder %s9, 1
    %p69 = scmp.ne.s32.totalorder %s64, %s66
    %p70 = scmp.eq.s32.totalorder %s9, 0
    %p71 = por %p69, %p70
    %p72 = scmp.ne.s32.totalorder %s64, %s66
    %p73 = scmp.eq.s32.totalorder %s14, 1
    %p74 = por %p72, %p73
    %p75 = scmp.ne.s32.totalorder %s66, %s67
    %p76 = scmp.eq.s32.totalorder %s14, 0
    %p77 = por %p75, %p76
    %p78 = scmp.ne.s32.totalorder %s66, %s67
    %p79 = scmp.eq.s32.totalorder %s15, 1
    %p80 = por %p78, %p79
    %p82 = scmp.ne.s32.totalorder %s67, %s81
    %p83 = scmp.eq.s32.totalorder %s15, 0
    %p84 = por %p82, %p83
    %s85 = ssub.s32 %s9, %s16
    %p86 = scmp.eq.s32.totalorder %s85, 0
    %s88 = sadd.s32 %s87, 1
    %s89 = scalar_select %p86, %s87, %s88
    %p92 = pneg %p86
    %p93 = scmp.eq.s32.totalorder %s9, 1
    %p94 = por %p92, %p93
    %p95 = scmp.ne.s32.totalorder %s87, %s90
    %p96 = scmp.eq.s32.totalorder %s9, 0
    %p97 = por %p95, %p96
    %p98 = scmp.ne.s32.totalorder %s87, %s90
    %p99 = scmp.eq.s32.totalorder %s14, 1
    %p100 = por %p98, %p99
    %p101 = scmp.ne.s32.totalorder %s90, %s91
    %p102 = scmp.eq.s32.totalorder %s14, 0
    %p103 = por %p101, %p102
    %p104 = scmp.ne.s32.totalorder %s90, %s91
    %p105 = scmp.eq.s32.totalorder %s15, 1
    %p106 = por %p104, %p105
    %p108 = scmp.ne.s32.totalorder %s91, %s107
    %p109 = scmp.eq.s32.totalorder %s15, 0
    %p110 = por %p108, %p109
    %p111 = scmp.le.s32.totalorder 1, %s9
    %p112 = scmp.lt.s32.totalorder %s9, 3
    %p113 = pnand %p111, %p112
    %p114 = pneg %p113
    // Predicated region
    $region9: #{conv_bn_forward.3} parent=5 // pred_check
      _
    $region10: #{conv_bn_forward.3} parent=5 // pred_check_branch
      %116 = sbr.rel (%p113) target = $region12
    $region11: #{conv_bn_forward.3} parent=5 // pred_region
      %s117 = ssub.s32 %s9, 1
      // Predicated region
      $region13: #{conv_bn_forward.3} parent=11 // pred_check
        %p118 = pneg %p56
      $region14: #{conv_bn_forward.3} parent=11 // pred_check_branch
        %120 = sbr.rel (%p118) target = $region16
      $region15: #{conv_bn_forward.3} parent=11 // pred_region
        _
      $region16: #{conv_bn_forward.3} parent=11 // pred_fallthru
        _
      // Predicated region
      $region17: #{conv_bn_forward.3} parent=11 // pred_check
        %p121 = pneg %p77
      $region18: #{conv_bn_forward.3} parent=11 // pred_check_branch
        %123 = sbr.rel (%p121) target = $region20
      $region19: #{conv_bn_forward.3} parent=11 // pred_region
        _
      $region20: #{conv_bn_forward.3} parent=11 // pred_fallthru
        _
    $region12: #{conv_bn_forward.3} parent=5 // pred_fallthru
      _
    %p124 = scmp.lt.s32.totalorder %s9, 2
    // Predicated region
    $region21: #{conv_bn_forward.3} parent=5 // pred_check
      %p125 = pneg %p124
    $region22: #{conv_bn_forward.3} parent=5 // pred_check_branch
      %127 = sbr.rel (%p125) target = $region24
    $region23: #{conv_bn_forward.3} parent=5 // pred_region
      // Predicated region
      $region25: #{conv_bn_forward.3} parent=23 // pred_check
        %p128 = pneg %p29
      $region26: #{conv_bn_forward.3} parent=23 // pred_check_branch
        %130 = sbr.rel (%p128) target = $region28
      $region27: #{conv_bn_forward.3} parent=23 // pred_region
        %p131 = scmp.lt.s32.totalorder %s9, 1
        %s132 = scalar_select %p131, %s9, 1
        %s133 = smul.addr %s132, 3
        %s134 = smul.addr %s133, 4
        %s135 = scalar_lea.vmem %s0, %s134
      $region28: #{conv_bn_forward.3} parent=23 // pred_fallthru
        _
    $region24: #{conv_bn_forward.3} parent=5 // pred_fallthru
      _
    %p136 = scmp.le.s32.totalorder 1, %s9
    %p137 = scmp.lt.s32.totalorder %s9, 3
    %p138 = pnand %p136, %p137
    %p139 = pneg %p138
    // Predicated region
    $region29: #{conv_bn_forward.3} parent=5 // pred_check
      _
    $region30: #{conv_bn_forward.3} parent=5 // pred_check_branch
      %141 = sbr.rel (%p138) target = $region32
    $region31: #{conv_bn_forward.3} parent=5 // pred_region
      %s142 = ssub.s32 %s9, 1
      %p143 = scmp.lt.s32.totalorder %s14, 1
      %s144 = scalar_select %p143, %s14, 1
      %s145 = smul.addr %s144, 3
      %s146 = smul.addr %s145, 4
      %s147 = scalar_lea.vmem %s0, %s146
      %p148 = pneg %p35
      %p149 = pneg %p32
      %p150 = pneg %p56
      %p151 = pneg %p53
      %p152 = pneg %p77
      %p153 = pneg %p74
      %p154 = pneg %p103
      %p155 = pneg %p100
      %p156 = scmp.lt.s32.totalorder %s14, 1
      %s157 = scalar_select %p156, %s14, 1
      %s158 = smul.addr %s157, 3
      %s159 = smul.addr %s158, 8
      %s160 = scalar_lea.vmem %s3, %s159
      %p161 = scmp.lt.s32.totalorder %s14, 1
      %s162 = scalar_select %p161, %s14, 1
      %s163 = smul.addr %s162, 3
      %s164 = smul.addr %s163, 4
      %s165 = scalar_lea.vmem %s0, %s164
      %p166 = scmp.lt.s32.totalorder %s14, 1
      %s167 = scalar_select %p166, %s14, 1
      %s168 = smul.addr %s167, 3
      %s169 = smul.addr %s168, 8
      %s170 = scalar_lea.vmem %s3, %s169
      %v171 = vld [vmem:[%s165] sm:$0xff]
      %v172 = vld [vmem:[%s165 + $0x8] sm:$0xf]
      %v173 = vunpack.c.l.bf16 %v171
      %v174 = vunpack.c.h.bf16 %v171
      %v175 = vunpack.c.l.bf16 %v172
      %v176 = vld [vmem:[%s1] sm:$0xff]
      %178 = vset.pattern.permute.xlu0 0
      %179 = vperm.xlu0 %178, %v176
      %v180 = vpop.permute.xlu0 %179
      %v182 = vmul.f32 %v173, %v180
      %v183 = vmul.f32 %v174, %v180
      %v184 = vmul.f32 %v175, %v180
      %v185 = vld [vmem:[%s2] sm:$0xff]
      %187 = vset.pattern.permute.xlu0 0
      %188 = vperm.xlu0 %187, %v185
      %v189 = vpop.permute.xlu0 %188
      %v191 = vadd.f32 %v182, %v189
      %v192 = vadd.f32 %v183, %v189
      %v193 = vadd.f32 %v184, %v189
      %194 = vst [vmem:[%s170] sm:$0xff] %v191
      %195 = vst [vmem:[%s170 + $0x8] sm:$0xff] %v192
      %196 = vst [vmem:[%s170 + $0x10] sm:$0xff] %v193
      %p197 = scmp.lt.s32.totalorder %s14, 1
      %s198 = scalar_select %p197, %s14, 1
      %s199 = smul.addr %s198, 3
      %s200 = smul.addr %s199, 8
      %s201 = scalar_lea.vmem %s3, %s200
      // Predicated region
      $region33: #{conv_bn_forward.3} parent=31 // pred_check
        %p202 = pneg %p100
      $region34: #{conv_bn_forward.3} parent=31 // pred_check_branch
        %204 = sbr.rel (%p202) target = $region36
      $region35: #{conv_bn_forward.3} parent=31 // pred_region
        _
      $region36: #{conv_bn_forward.3} parent=31 // pred_fallthru
        _
    $region32: #{conv_bn_forward.3} parent=5 // pred_fallthru
      _
    %p205 = scmp.le.s32.totalorder 2, %s9
    // Predicated region
    $region37: #{conv_bn_forward.3} parent=5 // pred_check
      %p206 = pneg %p205
    $region38: #{conv_bn_forward.3} parent=5 // pred_check_branch
      %208 = sbr.rel (%p206) target = $region40
    $region39: #{conv_bn_forward.3} parent=5 // pred_region
      %s209 = ssub.s32 %s9, 2
      // Predicated region
      $region41: #{conv_bn_forward.3} parent=39 // pred_check
        %p210 = pneg %p106
      $region42: #{conv_bn_forward.3} parent=39 // pred_check_branch
        %212 = sbr.rel (%p210) target = $region44
      $region43: #{conv_bn_forward.3} parent=39 // pred_region
        %p213 = scmp.lt.s32.totalorder %s15, 1
        %s214 = scalar_select %p213, %s15, 1
        %s215 = smul.addr %s214, 3
        %s216 = smul.addr %s215, 8
        %s217 = scalar_lea.vmem %s3, %s216
      $region44: #{conv_bn_forward.3} parent=39 // pred_fallthru
        _
    $region40: #{conv_bn_forward.3} parent=5 // pred_fallthru
      _
  $region6: #{conv_bn_forward.3} parent=0 // loop_footer
    %s13 = sadd.s32 1, %s9
  $region7: #{conv_bn_forward.3} parent=0 // loop_footer_branch
    %8 = sbr.rel target = $region3
  $region8: #{conv_bn_forward.3} parent=0 // loop_exit
    _

// kernel: conv_bn_forward.2
$region0: #{conv_bn_forward.2}
  #allocation0 [shape = 'u32[]', space=smem, size = 0x4, offset = 0x4, fixed_abs, tag = 'smem constant byte address 0x4 - core index']
  #allocation1 [shape = 'u32[144,128]{1,0:T(1,128)}', space=vmem, size = 0x12000, scoped, tag = 'internal scratch']
  %s0 = inlined_call_operand.vmem [shape: bf16[9,8,8], index: 0, kind: input, shape index: {}]
  %s1 = inlined_call_operand.vmem [shape: f32[1,384], index: 1, kind: input, shape index: {}]
  %s2 = inlined_call_operand.vmem [shape: bf16[2,8,512], index: 2, kind: input, shape index: {}]
  %s3 = inlined_call_operand.vmem [shape: bf16[2,8,384], index: 3, kind: output, shape index: {0}]
  %s4 = inlined_call_operand.vmem [shape: f32[2,8,1], index: 4, kind: output, shape index: {1}]
  %s5 = inlined_call_operand.vmem [shape: f32[2,8,1], index: 5, kind: output, shape index: {2}]
  %6 = xla_tuple %s3, %s4, %s5
  %s7 = sld [smem:[#allocation0]]
  $region61: #{conv_bn_forward.2} parent=0
    _
  %s9 = ssub.s32 1, %s7
  %s10 = scalar_select 0, %s9, %s7
  loop: start=0, step=1, limit=4
  $region2: #{conv_bn_forward.2} parent=0 // loop_pre_header
    _
  $region3: #{conv_bn_forward.2} parent=0 // loop_header
    %s12 = sphi 0, %s16
    %p13 = scmp.ge.s32.totalorder %s12, 4
    %s20 = sphi 0, %s20
    %s22 = sphi 0, %s20
    %s23 = sphi 0, %s22
    %s37 = sphi 0, %s23
    %s41 = sphi 0, %s41
    %s43 = sphi 0, %s41
    %s44 = sphi 0, %s43
    %s58 = sphi 0, %s44
    %s64 = sphi 0, %s66
    %s67 = sphi 0, %s64
    %s68 = sphi 0, %s67
    %s84 = sphi 0, %s68
    %s90 = sphi 0, %s92
    %s93 = sphi 0, %s90
    %s94 = sphi 0, %s93
    %s110 = sphi 0, %s94
    %s116 = sphi 0, %s118
    %s119 = sphi 0, %s116
    %s120 = sphi 0, %s119
    %s136 = sphi 0, %s120
    %s142 = sphi 0, %s144
    %s145 = sphi 0, %s142
    %s146 = sphi 0, %s145
    %s162 = sphi 0, %s146
  $region4: #{conv_bn_forward.2} parent=0 // loop_header_branch
    %15 = sbr.rel (%p13) target = $region8
  $region5: #{conv_bn_forward.2} parent=0 // loop_body
    %s17 = ssub.s32 %s12, 1
    %s18 = ssub.s32 %s12, 2
    %s19 = sadd.s32 %s12, 1
    %s21 = sadd.s32 %s20, 1
    %p24 = scmp.eq.s32.totalorder %s12, 1
    %p25 = scmp.ne.s32.totalorder %s20, %s22
    %p26 = scmp.eq.s32.totalorder %s12, 0
    %p27 = por %p25, %p26
    %p28 = scmp.ne.s32.totalorder %s20, %s22
    %p29 = scmp.eq.s32.totalorder %s17, 1
    %p30 = por %p28, %p29
    %p31 = scmp.ne.s32.totalorder %s22, %s23
    %p32 = scmp.eq.s32.totalorder %s17, 0
    %p33 = por %p31, %p32
    %p34 = scmp.ne.s32.totalorder %s22, %s23
    %p35 = scmp.eq.s32.totalorder %s18, 1
    %p36 = por %p34, %p35
    %p38 = scmp.ne.s32.totalorder %s23, %s37
    %p39 = scmp.eq.s32.totalorder %s18, 0
    %p40 = por %p38, %p39
    %s42 = sadd.s32 %s41, 1
    %p45 = scmp.eq.s32.totalorder %s12, 1
    %p46 = scmp.ne.s32.totalorder %s41, %s43
    %p47 = scmp.eq.s32.totalorder %s12, 0
    %p48 = por %p46, %p47
    %p49 = scmp.ne.s32.totalorder %s41, %s43
    %p50 = scmp.eq.s32.totalorder %s17, 1
    %p51 = por %p49, %p50
    %p52 = scmp.ne.s32.totalorder %s43, %s44
    %p53 = scmp.eq.s32.totalorder %s17, 0
    %p54 = por %p52, %p53
    %p55 = scmp.ne.s32.totalorder %s43, %s44
    %p56 = scmp.eq.s32.totalorder %s18, 1
    %p57 = por %p55, %p56
    %p59 = scmp.ne.s32.totalorder %s44, %s58
    %p60 = scmp.eq.s32.totalorder %s18, 0
    %p61 = por %p59, %p60
    %s62 = ssub.s32 %s12, %s19
    %p63 = scmp.eq.s32.totalorder %s62, 0
    %s65 = sadd.s32 %s64, 1
    %s66 = scalar_select %p63, %s64, %s65
    %p69 = pneg %p63
    %p70 = scmp.eq.s32.totalorder %s12, 1
    %p71 = por %p69, %p70
    %p72 = scmp.ne.s32.totalorder %s64, %s67
    %p73 = scmp.eq.s32.totalorder %s12, 0
    %p74 = por %p72, %p73
    %p75 = scmp.ne.s32.totalorder %s64, %s67
    %p76 = scmp.eq.s32.totalorder %s17, 1
    %p77 = por %p75, %p76
    %p78 = scmp.ne.s32.totalorder %s67, %s68
    %p79 = scmp.eq.s32.totalorder %s17, 0
    %p80 = por %p78, %p79
    %p81 = scmp.ne.s32.totalorder %s67, %s68
    %p82 = scmp.eq.s32.totalorder %s18, 1
    %p83 = por %p81, %p82
    %p85 = scmp.ne.s32.totalorder %s68, %s84
    %p86 = scmp.eq.s32.totalorder %s18, 0
    %p87 = por %p85, %p86
    %s88 = ssub.s32 %s12, %s19
    %p89 = scmp.eq.s32.totalorder %s88, 0
    %s91 = sadd.s32 %s90, 1
    %s92 = scalar_select %p89, %s90, %s91
    %p95 = pneg %p89
    %p96 = scmp.eq.s32.totalorder %s12, 1
    %p97 = por %p95, %p96
    %p98 = scmp.ne.s32.totalorder %s90, %s93
    %p99 = scmp.eq.s32.totalorder %s12, 0
    %p100 = por %p98, %p99
    %p101 = scmp.ne.s32.totalorder %s90, %s93
    %p102 = scmp.eq.s32.totalorder %s17, 1
    %p103 = por %p101, %p102
    %p104 = scmp.ne.s32.totalorder %s93, %s94
    %p105 = scmp.eq.s32.totalorder %s17, 0
    %p106 = por %p104, %p105
    %p107 = scmp.ne.s32.totalorder %s93, %s94
    %p108 = scmp.eq.s32.totalorder %s18, 1
    %p109 = por %p107, %p108
    %p111 = scmp.ne.s32.totalorder %s94, %s110
    %p112 = scmp.eq.s32.totalorder %s18, 0
    %p113 = por %p111, %p112
    %s114 = ssub.s32 %s12, %s19
    %p115 = scmp.eq.s32.totalorder %s114, 0
    %s117 = sadd.s32 %s116, 1
    %s118 = scalar_select %p115, %s116, %s117
    %p121 = pneg %p115
    %p122 = scmp.eq.s32.totalorder %s12, 1
    %p123 = por %p121, %p122
    %p124 = scmp.ne.s32.totalorder %s116, %s119
    %p125 = scmp.eq.s32.totalorder %s12, 0
    %p126 = por %p124, %p125
    %p127 = scmp.ne.s32.totalorder %s116, %s119
    %p128 = scmp.eq.s32.totalorder %s17, 1
    %p129 = por %p127, %p128
    %p130 = scmp.ne.s32.totalorder %s119, %s120
    %p131 = scmp.eq.s32.totalorder %s17, 0
    %p132 = por %p130, %p131
    %p133 = scmp.ne.s32.totalorder %s119, %s120
    %p134 = scmp.eq.s32.totalorder %s18, 1
    %p135 = por %p133, %p134
    %p137 = scmp.ne.s32.totalorder %s120, %s136
    %p138 = scmp.eq.s32.totalorder %s18, 0
    %p139 = por %p137, %p138
    %s140 = ssub.s32 %s12, %s19
    %p141 = scmp.eq.s32.totalorder %s140, 0
    %s143 = sadd.s32 %s142, 1
    %s144 = scalar_select %p141, %s142, %s143
    %p147 = pneg %p141
    %p148 = scmp.eq.s32.totalorder %s12, 1
    %p149 = por %p147, %p148
    %p150 = scmp.ne.s32.totalorder %s142, %s145
    %p151 = scmp.eq.s32.totalorder %s12, 0
    %p152 = por %p150, %p151
    %p153 = scmp.ne.s32.totalorder %s142, %s145
    %p154 = scmp.eq.s32.totalorder %s17, 1
    %p155 = por %p153, %p154
    %p156 = scmp.ne.s32.totalorder %s145, %s146
    %p157 = scmp.eq.s32.totalorder %s17, 0
    %p158 = por %p156, %p157
    %p159 = scmp.ne.s32.totalorder %s145, %s146
    %p160 = scmp.eq.s32.totalorder %s18, 1
    %p161 = por %p159, %p160
    %p163 = scmp.ne.s32.totalorder %s146, %s162
    %p164 = scmp.eq.s32.totalorder %s18, 0
    %p165 = por %p163, %p164
    %p166 = scmp.le.s32.totalorder 1, %s12
    %p167 = scmp.lt.s32.totalorder %s12, 3
    %p168 = pnand %p166, %p167
    %p169 = pneg %p168
    // Predicated region
    $region9: #{conv_bn_forward.2} parent=5 // pred_check
      _
    $region10: #{conv_bn_forward.2} parent=5 // pred_check_branch
      %171 = sbr.rel (%p168) target = $region12
    $region11: #{conv_bn_forward.2} parent=5 // pred_region
      %s172 = ssub.s32 %s12, 1
      // Predicated region
      $region13: #{conv_bn_forward.2} parent=11 // pred_check
        %p173 = pneg %p33
      $region14: #{conv_bn_forward.2} parent=11 // pred_check_branch
        %175 = sbr.rel (%p173) target = $region16
      $region15: #{conv_bn_forward.2} parent=11 // pred_region
        _
      $region16: #{conv_bn_forward.2} parent=11 // pred_fallthru
        _
      // Predicated region
      $region17: #{conv_bn_forward.2} parent=11 // pred_check
        %p176 = pneg %p54
      $region18: #{conv_bn_forward.2} parent=11 // pred_check_branch
        %178 = sbr.rel (%p176) target = $region20
      $region19: #{conv_bn_forward.2} parent=11 // pred_region
        _
      $region20: #{conv_bn_forward.2} parent=11 // pred_fallthru
        _
    $region12: #{conv_bn_forward.2} parent=5 // pred_fallthru
      _
    %p179 = scmp.lt.s32.totalorder %s12, 2
    // Predicated region
    $region21: #{conv_bn_forward.2} parent=5 // pred_check
      %p180 = pneg %p179
    $region22: #{conv_bn_forward.2} parent=5 // pred_check_branch
      %182 = sbr.rel (%p180) target = $region24
    $region23: #{conv_bn_forward.2} parent=5 // pred_region
      // Predicated region
      $region25: #{conv_bn_forward.2} parent=23 // pred_check
        %p183 = pneg %p74
      $region26: #{conv_bn_forward.2} parent=23 // pred_check_branch
        %185 = sbr.rel (%p183) target = $region28
      $region27: #{conv_bn_forward.2} parent=23 // pred_region
        %p186 = scmp.lt.s32.totalorder %s12, 1
        %s187 = scalar_select %p186, %s12, 1
        %s188 = smul.addr %s187, 4
        %s189 = smul.addr %s188, 4
        %s190 = scalar_lea.vmem %s2, %s189
      $region28: #{conv_bn_forward.2} parent=23 // pred_fallthru
        _
    $region24: #{conv_bn_forward.2} parent=5 // pred_fallthru
      _
    %p191 = scmp.le.s32.totalorder 1, %s12
    %p192 = scmp.lt.s32.totalorder %s12, 3
    %p193 = pnand %p191, %p192
    %p194 = pneg %p193
    // Predicated region
    $region29: #{conv_bn_forward.2} parent=5 // pred_check
      _
    $region30: #{conv_bn_forward.2} parent=5 // pred_check_branch
      %196 = sbr.rel (%p193) target = $region32
    $region31: #{conv_bn_forward.2} parent=5 // pred_region
      %s197 = ssub.s32 %s12, 1
      %p198 = pneg %p33
      %p199 = pneg %p30
      %p200 = pneg %p54
      %p201 = pneg %p51
      %p202 = scmp.lt.s32.totalorder %s17, 1
      %s203 = scalar_select %p202, %s17, 1
      %s204 = smul.addr %s203, 4
      %s205 = smul.addr %s204, 4
      %s206 = scalar_lea.vmem %s2, %s205
      %p207 = pneg %p80
      %p208 = pneg %p77
      %p209 = pneg %p106
      %p210 = pneg %p103
      %p211 = scmp.lt.s32.totalorder %s17, 1
      %s212 = scalar_select %p211, %s17, 1
      %s213 = smul.addr %s212, 3
      %s214 = smul.addr %s213, 4
      %s215 = scalar_lea.vmem %s3, %s214
      %p216 = pneg %p132
      %p217 = pneg %p129
      %p218 = scmp.lt.s32.totalorder %s17, 1
      %s219 = scalar_select %p218, %s17, 1
      %s220 = smul.addr %s219, 8
      %s221 = scalar_lea.vmem %s4, %s220
      %p222 = pneg %p158
      %p223 = pneg %p155
      %p224 = scmp.lt.s32.totalorder %s17, 1
      %s225 = scalar_select %p224, %s17, 1
      %s226 = smul.addr %s225, 8
      %s227 = scalar_lea.vmem %s5, %s226
      %p228 = scmp.lt.s32.totalorder %s17, 1
      %s229 = scalar_select %p228, %s17, 1
      %s230 = smul.addr %s229, 4
      %s231 = smul.addr %s230, 4
      %s232 = scalar_lea.vmem %s2, %s231
      %p233 = scmp.lt.s32.totalorder %s17, 1
      %s234 = scalar_select %p233, %s17, 1
      %s235 = smul.addr %s234, 3
      %s236 = smul.addr %s235, 4
      %s237 = scalar_lea.vmem %s3, %s236
      %p238 = scmp.lt.s32.totalorder %s17, 1
      %s239 = scalar_select %p238, %s17, 1
      %s240 = smul.addr %s239, 8
      %s241 = scalar_lea.vmem %s4, %s240
      %p242 = scmp.lt.s32.totalorder %s17, 1
      %s243 = scalar_select %p242, %s17, 1
      %s244 = smul.addr %s243, 8
      %s245 = scalar_lea.vmem %s5, %s244
      %v247 = vld [vmem:[%s232] sm:$0xff]
      %v248 = vld [vmem:[%s232 + $0x8] sm:$0xf]
      %v249 = vld [vmem:[%s0] sm:$0xf]
      %v250 = vld [vmem:[%s232] sm:$0xff]
      %v251 = vld [vmem:[%s232 + $0x8] sm:$0xff]
      %s252 = scalar_lea.vmem %s0, 4
      %v253 = vld [vmem:[%s252] sm:$0xf]
      %v256 = vunpack.c.l.b16 %v250
      %v257 = vunpack.c.h.b16 %v250
      %v258 = vunpack.c.l.b16 %v251
      %v259 = vunpack.c.h.b16 %v251
      %v260 = vpack.c.b16 %v256, %v256
      %v261 = vpack.c.b16 %v257, %v257
      %v262 = vpack.c.b16 %v258, %v258
      %v263 = vpack.c.b16 %v259, %v259
      %264 = vrot.lane.b32.xlu0 %v260, 127
      %v265 = vpop.permute.xlu0 %264
      %266 = vrot.lane.b32.xlu0 %v261, 127
      %v267 = vpop.permute.xlu0 %266
      %268 = vrot.lane.b32.xlu0 %v262, 127
      %v269 = vpop.permute.xlu0 %268
      %270 = vrot.lane.b32.xlu0 %v263, 127
      %v271 = vpop.permute.xlu0 %270
      %vm272 = vcmask 1039360
      %v273 = vsel %vm272, %v265, %v267
      %v274 = vsel %vm272, %v267, %v269
      %v275 = vsel %vm272, %v269, %v271
      %vm276 = vcmask 64512
      %v278 = vsel %vm276, %v253, 0
      %vm280 = vcmask 1043456
      %v282 = vsel %vm280, %v273, 0
      %v285 = vsel %vm280, %v274, 0
      %v288 = vsel %vm280, %v275, 0
      %290 = vmatprep.subr.bf16.mxu0 0
      %291 = vmatpush1.bf16.msra.mxu0 0
      %292 = vmatprep.subr.bf16.mxu0 0
      %293 = vmatpush1.bf16.msra.mxu0 0
      %294 = vmatprep.subr.bf16.mxu0 0
      %295 = vmatpush1.bf16.msra.mxu0 0
      %296 = vmatprep.subr.bf16.mxu0 0
      %297 = vmatpush1.bf16.msra.mxu0 0
      %298 = vmatprep.subr.bf16.mxu0 0
      %299 = vmatpush1.bf16.msra.mxu0 0
      %300 = vmatprep.subr.bf16.mxu0 0
      %301 = vmatpush1.bf16.msra.mxu0 0
      %302 = vmatprep.subr.bf16.mxu0 0
      %303 = vmatpush1.bf16.msra.mxu0 0
      %304 = vmatprep.subr.bf16.mxu0 %v285
      %305 = vmatpush1.bf16.msra.mxu0 %v282
      %306 = vmatprep.subr.bf16.mxu0 0
      %307 = vmatpush2.bf16.msra.mxu0 0
      %308 = vmatprep.subr.bf16.mxu0 0
      %309 = vmatpush2.bf16.msra.mxu0 0
      %310 = vmatprep.subr.bf16.mxu0 0
      %311 = vmatpush2.bf16.msra.mxu0 0
      %312 = vmatprep.subr.bf16.mxu0 0
      %313 = vmatpush2.bf16.msra.mxu0 0
      %314 = vmatprep.subr.bf16.mxu0 0
      %315 = vmatpush2.bf16.msra.mxu0 0
      %316 = vmatprep.subr.bf16.mxu0 0
      %317 = vmatpush2.bf16.msra.mxu0 0
      %318 = vmatprep.subr.bf16.mxu0 0
      %319 = vmatpush2.bf16.msra.mxu0 0
      %320 = vmatprep.subr.bf16.mxu0 0
      %321 = vmatpush2.bf16.msra.mxu0 0
      %322 = vmatprep.mubr.bf16.mxu0 0
      %323 = vmatmul.mubr.bf16.gmra.mxu0 %v278
      %v324 = vpop.f32.mrf.mxu0
      %v325 = vadd.f32 0.0, %v324
      %v326 = vpop.f32.mrf.mxu0
      %v327 = vadd.f32 0.0, %v326
      %v328 = vpop.f32.mrf.mxu0
      %v329 = vpop.f32.mrf.mxu0
      %330 = vdwg.mxu0
      %331 = vmatprep.subr.bf16.mxu0 0
      %332 = vmatpush1.bf16.msra.mxu0 0
      %333 = vmatprep.subr.bf16.mxu0 0
      %334 = vmatpush1.bf16.msra.mxu0 0
      %335 = vmatprep.subr.bf16.mxu0 0
      %336 = vmatpush1.bf16.msra.mxu0 0
      %337 = vmatprep.subr.bf16.mxu0 0
      %338 = vmatpush1.bf16.msra.mxu0 0
      %339 = vmatprep.subr.bf16.mxu0 0
      %340 = vmatpush1.bf16.msra.mxu0 0
      %341 = vmatprep.subr.bf16.mxu0 0
      %342 = vmatpush1.bf16.msra.mxu0 0
      %343 = vmatprep.subr.bf16.mxu0 0
      %344 = vmatpush1.bf16.msra.mxu0 0
      %345 = vmatprep.subr.bf16.mxu0 0
      %346 = vmatpush1.bf16.msra.mxu0 %v288
      %347 = vmatprep.subr.bf16.mxu0 0
      %348 = vmatpush2.bf16.msra.mxu0 0
      %349 = vmatprep.subr.bf16.mxu0 0
      %350 = vmatpush2.bf16.msra.mxu0 0
      %351 = vmatprep.subr.bf16.mxu0 0
      %352 = vmatpush2.bf16.msra.mxu0 0
      %353 = vmatprep.subr.bf16.mxu0 0
      %354 = vmatpush2.bf16.msra.mxu0 0
      %355 = vmatprep.subr.bf16.mxu0 0
      %356 = vmatpush2.bf16.msra.mxu0 0
      %357 = vmatprep.subr.bf16.mxu0 0
      %358 = vmatpush2.bf16.msra.mxu0 0
      %359 = vmatprep.subr.bf16.mxu0 0
      %360 = vmatpush2.bf16.msra.mxu0 0
      %361 = vmatprep.subr.bf16.mxu0 0
      %362 = vmatpush2.bf16.msra.mxu0 0
      %363 = vmatprep.mubr.bf16.mxu0 0
      %364 = vmatmul.mubr.bf16.gmra.mxu0 %v278
      %v365 = vpop.f32.mrf.mxu0
      %v366 = vadd.f32 0.0, %v365
      %v367 = vpop.f32.mrf.mxu0
      %v368 = vpop.f32.mrf.mxu0
      %v369 = vpop.f32.mrf.mxu0
      %370 = vdwg.mxu0
      %v373 = vunpack.c.l.b16 %v247
      %v374 = vunpack.c.h.b16 %v247
      %v375 = vunpack.c.l.b16 %v248
      %v376 = vpack.c.b16 %v373, %v373
      %v377 = vpack.c.b16 %v374, %v374
      %v378 = vpack.c.b16 %v375, %v375
      %v380 = vsel %vm276, %v249, 0
      %v383 = vsel %vm280, %v376, 0
      %v386 = vsel %vm280, %v377, 0
      %v389 = vsel %vm280, %v378, 0
      %391 = vmatprep.subr.bf16.mxu0 0
      %392 = vmatpush1.bf16.msra.mxu0 0
      %393 = vmatprep.subr.bf16.mxu0 0
      %394 = vmatpush1.bf16.msra.mxu0 0
      %395 = vmatprep.subr.bf16.mxu0 0
      %396 = vmatpush1.bf16.msra.mxu0 0
      %397 = vmatprep.subr.bf16.mxu0 0
      %398 = vmatpush1.bf16.msra.mxu0 0
      %399 = vmatprep.subr.bf16.mxu0 0
      %400 = vmatpush1.bf16.msra.mxu0 0
      %401 = vmatprep.subr.bf16.mxu0 0
      %402 = vmatpush1.bf16.msra.mxu0 0
      %403 = vmatprep.subr.bf16.mxu0 0
      %404 = vmatpush1.bf16.msra.mxu0 0
      %405 = vmatprep.subr.bf16.mxu0 %v386
      %406 = vmatpush1.bf16.msra.mxu0 %v383
      %407 = vmatprep.subr.bf16.mxu0 0
      %408 = vmatpush2.bf16.msra.mxu0 0
      %409 = vmatprep.subr.bf16.mxu0 0
      %410 = vmatpush2.bf16.msra.mxu0 0
      %411 = vmatprep.subr.bf16.mxu0 0
      %412 = vmatpush2.bf16.msra.mxu0 0
      %413 = vmatprep.subr.bf16.mxu0 0
      %414 = vmatpush2.bf16.msra.mxu0 0
      %415 = vmatprep.subr.bf16.mxu0 0
      %416 = vmatpush2.bf16.msra.mxu0 0
      %417 = vmatprep.subr.bf16.mxu0 0
      %418 = vmatpush2.bf16.msra.mxu0 0
      %419 = vmatprep.subr.bf16.mxu0 0
      %420 = vmatpush2.bf16.msra.mxu0 0
      %421 = vmatprep.subr.bf16.mxu0 0
      %422 = vmatpush2.bf16.msra.mxu0 0
      %423 = vmatprep.mubr.bf16.mxu0 0
      %424 = vmatmul.mubr.bf16.gmra.mxu0 %v380
      %v425 = vpop.f32.mrf.mxu0
      %v426 = vadd.f32 %v325, %v425
      %v427 = vpop.f32.mrf.mxu0
      %v428 = vadd.f32 %v327, %v427
      %v429 = vpop.f32.mrf.mxu0
      %v430 = vpop.f32.mrf.mxu0
      %431 = vdwg.mxu0
      %432 = vmatprep.subr.bf16.mxu0 0
      %433 = vmatpush1.bf16.msra.mxu0 0
      %434 = vmatprep.subr.bf16.mxu0 0
      %435 = vmatpush1.bf16.msra.mxu0 0
      %436 = vmatprep.subr.bf16.mxu0 0
      %437 = vmatpush1.bf16.msra.mxu0 0
      %438 = vmatprep.subr.bf16.mxu0 0
      %439 = vmatpush1.bf16.msra.mxu0 0
      %440 = vmatprep.subr.bf16.mxu0 0
      %441 = vmatpush1.bf16.msra.mxu0 0
      %442 = vmatprep.subr.bf16.mxu0 0
      %443 = vmatpush1.bf16.msra.mxu0 0
      %444 = vmatprep.subr.bf16.mxu0 0
      %445 = vmatpush1.bf16.msra.mxu0 0
      %446 = vmatprep.subr.bf16.mxu0 0
      %447 = vmatpush1.bf16.msra.mxu0 %v389
      %448 = vmatprep.subr.bf16.mxu0 0
      %449 = vmatpush2.bf16.msra.mxu0 0
      %450 = vmatprep.subr.bf16.mxu0 0
      %451 = vmatpush2.bf16.msra.mxu0 0
      %452 = vmatprep.subr.bf16.mxu0 0
      %453 = vmatpush2.bf16.msra.mxu0 0
      %454 = vmatprep.subr.bf16.mxu0 0
      %455 = vmatpush2.bf16.msra.mxu0 0
      %456 = vmatprep.subr.bf16.mxu0 0
      %457 = vmatpush2.bf16.msra.mxu0 0
      %458 = vmatprep.subr.bf16.mxu0 0
      %459 = vmatpush2.bf16.msra.mxu0 0
      %460 = vmatprep.subr.bf16.mxu0 0
      %461 = vmatpush2.bf16.msra.mxu0 0
      %462 = vmatprep.subr.bf16.mxu0 0
      %463 = vmatpush2.bf16.msra.mxu0 0
      %464 = vmatprep.mubr.bf16.mxu0 0
      %465 = vmatmul.mubr.bf16.gmra.mxu0 %v380
      %v466 = vpop.f32.mrf.mxu0
      %v467 = vadd.f32 %v366, %v466
      %v468 = vpop.f32.mrf.mxu0
      %v469 = vpop.f32.mrf.mxu0
      %v470 = vpop.f32.mrf.mxu0
      %471 = vdwg.mxu0
      %s472 = scalar_lea.vmem %s0, 8
      %v473 = vld [vmem:[%s472] sm:$0xf]
      %474 = vrot.lane.b32.xlu0 %v260, 126
      %v475 = vpop.permute.xlu0 %474
      %476 = vrot.lane.b32.xlu0 %v261, 126
      %v477 = vpop.permute.xlu0 %476
      %478 = vrot.lane.b32.xlu0 %v262, 126
      %v479 = vpop.permute.xlu0 %478
      %480 = vrot.lane.b32.xlu0 %v263, 126
      %v481 = vpop.permute.xlu0 %480
      %vm482 = vcmask 1031168
      %v483 = vsel %vm482, %v475, %v477
      %v484 = vsel %vm482, %v477, %v479
      %v485 = vsel %vm482, %v479, %v481
      %v487 = vsel %vm276, %v473, 0
      %v490 = vsel %vm280, %v483, 0
      %v493 = vsel %vm280, %v484, 0
      %v496 = vsel %vm280, %v485, 0
      %498 = vmatprep.subr.bf16.mxu0 0
      %499 = vmatpush1.bf16.msra.mxu0 0
      %500 = vmatprep.subr.bf16.mxu0 0
      %501 = vmatpush1.bf16.msra.mxu0 0
      %502 = vmatprep.subr.bf16.mxu0 0
      %503 = vmatpush1.bf16.msra.mxu0 0
      %504 = vmatprep.subr.bf16.mxu0 0
      %505 = vmatpush1.bf16.msra.mxu0 0
      %506 = vmatprep.subr.bf16.mxu0 0
      %507 = vmatpush1.bf16.msra.mxu0 0
      %508 = vmatprep.subr.bf16.mxu0 0
      %509 = vmatpush1.bf16.msra.mxu0 0
      %510 = vmatprep.subr.bf16.mxu0 0
      %511 = vmatpush1.bf16.msra.mxu0 0
      %512 = vmatprep.subr.bf16.mxu0 %v493
      %513 = vmatpush1.bf16.msra.mxu0 %v490
      %514 = vmatprep.subr.bf16.mxu0 0
      %515 = vmatpush2.bf16.msra.mxu0 0
      %516 = vmatprep.subr.bf16.mxu0 0
      %517 = vmatpush2.bf16.msra.mxu0 0
      %518 = vmatprep.subr.bf16.mxu0 0
      %519 = vmatpush2.bf16.msra.mxu0 0
      %520 = vmatprep.subr.bf16.mxu0 0
      %521 = vmatpush2.bf16.msra.mxu0 0
      %522 = vmatprep.subr.bf16.mxu0 0
      %523 = vmatpush2.bf16.msra.mxu0 0
      %524 = vmatprep.subr.bf16.mxu0 0
      %525 = vmatpush2.bf16.msra.mxu0 0
      %526 = vmatprep.subr.bf16.mxu0 0
      %527 = vmatpush2.bf16.msra.mxu0 0
      %528 = vmatprep.subr.bf16.mxu0 0
      %529 = vmatpush2.bf16.msra.mxu0 0
      %530 = vmatprep.mubr.bf16.mxu0 0
      %531 = vmatmul.mubr.bf16.gmra.mxu0 %v487
      %v532 = vpop.f32.mrf.mxu0
      %v533 = vadd.f32 0.0, %v532
      %v534 = vpop.f32.mrf.mxu0
      %v535 = vadd.f32 0.0, %v534
      %v536 = vpop.f32.mrf.mxu0
      %v537 = vpop.f32.mrf.mxu0
      %538 = vdwg.mxu0
      %539 = vmatprep.subr.bf16.mxu0 0
      %540 = vmatpush1.bf16.msra.mxu0 0
      %541 = vmatprep.subr.bf16.mxu0 0
      %542 = vmatpush1.bf16.msra.mxu0 0
      %543 = vmatprep.subr.bf16.mxu0 0
      %544 = vmatpush1.bf16.msra.mxu0 0
      %545 = vmatprep.subr.bf16.mxu0 0
      %546 = vmatpush1.bf16.msra.mxu0 0
      %547 = vmatprep.subr.bf16.mxu0 0
      %548 = vmatpush1.bf16.msra.mxu0 0
      %549 = vmatprep.subr.bf16.mxu0 0
      %550 = vmatpush1.bf16.msra.mxu0 0
      %551 = vmatprep.subr.bf16.mxu0 0
      %552 = vmatpush1.bf16.msra.mxu0 0
      %553 = vmatprep.subr.bf16.mxu0 0
      %554 = vmatpush1.bf16.msra.mxu0 %v496
      %555 = vmatprep.subr.bf16.mxu0 0
      %556 = vmatpush2.bf16.msra.mxu0 0
      %557 = vmatprep.subr.bf16.mxu0 0
      %558 = vmatpush2.bf16.msra.mxu0 0
      %559 = vmatprep.subr.bf16.mxu0 0
      %560 = vmatpush2.bf16.msra.mxu0 0
      %561 = vmatprep.subr.bf16.mxu0 0
      %562 = vmatpush2.bf16.msra.mxu0 0
      %563 = vmatprep.subr.bf16.mxu0 0
      %564 = vmatpush2.bf16.msra.mxu0 0
      %565 = vmatprep.subr.bf16.mxu0 0
      %566 = vmatpush2.bf16.msra.mxu0 0
      %567 = vmatprep.subr.bf16.mxu0 0
      %568 = vmatpush2.bf16.msra.mxu0 0
      %569 = vmatprep.subr.bf16.mxu0 0
      %570 = vmatpush2.bf16.msra.mxu0 0
      %571 = vmatprep.mubr.bf16.mxu0 0
      %572 = vmatmul.mubr.bf16.gmra.mxu0 %v487
      %v573 = vpop.f32.mrf.mxu0
      %v574 = vadd.f32 0.0, %v573
      %v575 = vpop.f32.mrf.mxu0
      %v576 = vpop.f32.mrf.mxu0
      %v577 = vpop.f32.mrf.mxu0
      %578 = vdwg.mxu0
      %v579 = vadd.f32 %v426, %v533
      %v580 = vadd.f32 %v428, %v535
      %v581 = vadd.f32 %v467, %v574
      %s582 = scalar_lea.vmem %s0, 12
      %v583 = vld [vmem:[%s582] sm:$0xf]
      %584 = vrot.lane.b32.xlu0 %v260, 110
      %v585 = vpop.permute.xlu0 %584
      %586 = vrot.lane.b32.xlu0 %v261, 110
      %v587 = vpop.permute.xlu0 %586
      %588 = vrot.lane.b32.xlu0 %v262, 110
      %v589 = vpop.permute.xlu0 %588
      %590 = vrot.lane.b32.xlu0 %v263, 110
      %v591 = vpop.permute.xlu0 %590
      %vm592 = vcmask 900096
      %v593 = vsel %vm592, %v585, %v587
      %v594 = vsel %vm592, %v587, %v589
      %v595 = vsel %vm592, %v589, %v591
      %v597 = vsel %vm276, %v583, 0
      %v600 = vsel %vm280, %v593, 0
      %v603 = vsel %vm280, %v594, 0
      %v606 = vsel %vm280, %v595, 0
      %608 = vmatprep.subr.bf16.mxu0 0
      %609 = vmatpush1.bf16.msra.mxu0 0
      %610 = vmatprep.subr.bf16.mxu0 0
      %611 = vmatpush1.bf16.msra.mxu0 0
      %612 = vmatprep.subr.bf16.mxu0 0
      %613 = vmatpush1.bf16.msra.mxu0 0
      %614 = vmatprep.subr.bf16.mxu0 0
      %615 = vmatpush1.bf16.msra.mxu0 0
      %616 = vmatprep.subr.bf16.mxu0 0
      %617 = vmatpush1.bf16.msra.mxu0 0
      %618 = vmatprep.subr.bf16.mxu0 0
      %619 = vmatpush1.bf16.msra.mxu0 0
      %620 = vmatprep.subr.bf16.mxu0 0
      %621 = vmatpush1.bf16.msra.mxu0 0
      %622 = vmatprep.subr.bf16.mxu0 %v603
      %623 = vmatpush1.bf16.msra.mxu0 %v600
      %624 = vmatprep.subr.bf16.mxu0 0
      %625 = vmatpush2.bf16.msra.mxu0 0
      %626 = vmatprep.subr.bf16.mxu0 0
      %627 = vmatpush2.bf16.msra.mxu0 0
      %628 = vmatprep.subr.bf16.mxu0 0
      %629 = vmatpush2.bf16.msra.mxu0 0
      %630 = vmatprep.subr.bf16.mxu0 0
      %631 = vmatpush2.bf16.msra.mxu0 0
      %632 = vmatprep.subr.bf16.mxu0 0
      %633 = vmatpush2.bf16.msra.mxu0 0
      %634 = vmatprep.subr.bf16.mxu0 0
      %635 = vmatpush2.bf16.msra.mxu0 0
      %636 = vmatprep.subr.bf16.mxu0 0
      %637 = vmatpush2.bf16.msra.mxu0 0
      %638 = vmatprep.subr.bf16.mxu0 0
      %639 = vmatpush2.bf16.msra.mxu0 0
      %640 = vmatprep.mubr.bf16.mxu0 0
      %641 = vmatmul.mubr.bf16.gmra.mxu0 %v597
      %v642 = vpop.f32.mrf.mxu0
      %v643 = vadd.f32 0.0, %v642
      %v644 = vpop.f32.mrf.mxu0
      %v645 = vadd.f32 0.0, %v644
      %v646 = vpop.f32.mrf.mxu0
      %v647 = vpop.f32.mrf.mxu0
      %648 = vdwg.mxu0
      %649 = vmatprep.subr.bf16.mxu0 0
      %650 = vmatpush1.bf16.msra.mxu0 0
      %651 = vmatprep.subr.bf16.mxu0 0
      %652 = vmatpush1.bf16.msra.mxu0 0
      %653 = vmatprep.subr.bf16.mxu0 0
      %654 = vmatpush1.bf16.msra.mxu0 0
      %655 = vmatprep.subr.bf16.mxu0 0
      %656 = vmatpush1.bf16.msra.mxu0 0
      %657 = vmatprep.subr.bf16.mxu0 0
      %658 = vmatpush1.bf16.msra.mxu0 0
      %659 = vmatprep.subr.bf16.mxu0 0
      %660 = vmatpush1.bf16.msra.mxu0 0
      %661 = vmatprep.subr.bf16.mxu0 0
      %662 = vmatpush1.bf16.msra.mxu0 0
      %663 = vmatprep.subr.bf16.mxu0 0
      %664 = vmatpush1.bf16.msra.mxu0 %v606
      %665 = vmatprep.subr.bf16.mxu0 0
      %666 = vmatpush2.bf16.msra.mxu0 0
      %667 = vmatprep.subr.bf16.mxu0 0
      %668 = vmatpush2.bf16.msra.mxu0 0
      %669 = vmatprep.subr.bf16.mxu0 0
      %670 = vmatpush2.bf16.msra.mxu0 0
      %671 = vmatprep.subr.bf16.mxu0 0
      %672 = vmatpush2.bf16.msra.mxu0 0
      %673 = vmatprep.subr.bf16.mxu0 0
      %674 = vmatpush2.bf16.msra.mxu0 0
      %675 = vmatprep.subr.bf16.mxu0 0
      %676 = vmatpush2.bf16.msra.mxu0 0
      %677 = vmatprep.subr.bf16.mxu0 0
      %678 = vmatpush2.bf16.msra.mxu0 0
      %679 = vmatprep.subr.bf16.mxu0 0
      %680 = vmatpush2.bf16.msra.mxu0 0
      %681 = vmatprep.mubr.bf16.mxu0 0
      %682 = vmatmul.mubr.bf16.gmra.mxu0 %v597
      %v683 = vpop.f32.mrf.mxu0
      %v684 = vadd.f32 0.0, %v683
      %v685 = vpop.f32.mrf.mxu0
      %v686 = vpop.f32.mrf.mxu0
      %v687 = vpop.f32.mrf.mxu0
      %688 = vdwg.mxu0
      %v689 = vadd.f32 %v579, %v643
      %v690 = vadd.f32 %v580, %v645
      %v691 = vadd.f32 %v581, %v684
      %s692 = scalar_lea.vmem %s0, 16
      %v693 = vld [vmem:[%s692] sm:$0xf]
      %694 = vrot.lane.b32.xlu0 %v260, 109
      %v695 = vpop.permute.xlu0 %694
      %696 = vrot.lane.b32.xlu0 %v261, 109
      %v697 = vpop.permute.xlu0 %696
      %698 = vrot.lane.b32.xlu0 %v262, 109
      %v699 = vpop.permute.xlu0 %698
      %700 = vrot.lane.b32.xlu0 %v263, 109
      %v701 = vpop.permute.xlu0 %700
      %vm702 = vcmask 891904
      %v703 = vsel %vm702, %v695, %v697
      %v704 = vsel %vm702, %v697, %v699
      %v705 = vsel %vm702, %v699, %v701
      %v707 = vsel %vm276, %v693, 0
      %v710 = vsel %vm280, %v703, 0
      %v713 = vsel %vm280, %v704, 0
      %v716 = vsel %vm280, %v705, 0
      %718 = vmatprep.subr.bf16.mxu0 0
      %719 = vmatpush1.bf16.msra.mxu0 0
      %720 = vmatprep.subr.bf16.mxu0 0
      %721 = vmatpush1.bf16.msra.mxu0 0
      %722 = vmatprep.subr.bf16.mxu0 0
      %723 = vmatpush1.bf16.msra.mxu0 0
      %724 = vmatprep.subr.bf16.mxu0 0
      %725 = vmatpush1.bf16.msra.mxu0 0
      %726 = vmatprep.subr.bf16.mxu0 0
      %727 = vmatpush1.bf16.msra.mxu0 0
      %728 = vmatprep.subr.bf16.mxu0 0
      %729 = vmatpush1.bf16.msra.mxu0 0
      %730 = vmatprep.subr.bf16.mxu0 0
      %731 = vmatpush1.bf16.msra.mxu0 0
      %732 = vmatprep.subr.bf16.mxu0 %v713
      %733 = vmatpush1.bf16.msra.mxu0 %v710
      %734 = vmatprep.subr.bf16.mxu0 0
      %735 = vmatpush2.bf16.msra.mxu0 0
      %736 = vmatprep.subr.bf16.mxu0 0
      %737 = vmatpush2.bf16.msra.mxu0 0
      %738 = vmatprep.subr.bf16.mxu0 0
      %739 = vmatpush2.bf16.msra.mxu0 0
      %740 = vmatprep.subr.bf16.mxu0 0
      %741 = vmatpush2.bf16.msra.mxu0 0
      %742 = vmatprep.subr.bf16.mxu0 0
      %743 = vmatpush2.bf16.msra.mxu0 0
      %744 = vmatprep.subr.bf16.mxu0 0
      %745 = vmatpush2.bf16.msra.mxu0 0
      %746 = vmatprep.subr.bf16.mxu0 0
      %747 = vmatpush2.bf16.msra.mxu0 0
      %748 = vmatprep.subr.bf16.mxu0 0
      %749 = vmatpush2.bf16.msra.mxu0 0
      %750 = vmatprep.mubr.bf16.mxu0 0
      %751 = vmatmul.mubr.bf16.gmra.mxu0 %v707
      %v752 = vpop.f32.mrf.mxu0
      %v753 = vadd.f32 0.0, %v752
      %v754 = vpop.f32.mrf.mxu0
      %v755 = vadd.f32 0.0, %v754
      %v756 = vpop.f32.mrf.mxu0
      %v757 = vpop.f32.mrf.mxu0
      %758 = vdwg.mxu0
      %759 = vmatprep.subr.bf16.mxu0 0
      %760 = vmatpush1.bf16.msra.mxu0 0
      %761 = vmatprep.subr.bf16.mxu0 0
      %762 = vmatpush1.bf16.msra.mxu0 0
      %763 = vmatprep.subr.bf16.mxu0 0
      %764 = vmatpush1.bf16.msra.mxu0 0
      %765 = vmatprep.subr.bf16.mxu0 0
      %766 = vmatpush1.bf16.msra.mxu0 0
      %767 = vmatprep.subr.bf16.mxu0 0
      %768 = vmatpush1.bf16.msra.mxu0 0
      %769 = vmatprep.subr.bf16.mxu0 0
      %770 = vmatpush1.bf16.msra.mxu0 0
      %771 = vmatprep.subr.bf16.mxu0 0
      %772 = vmatpush1.bf16.msra.mxu0 0
      %773 = vmatprep.subr.bf16.mxu0 0
      %774 = vmatpush1.bf16.msra.mxu0 %v716
      %775 = vmatprep.subr.bf16.mxu0 0
      %776 = vmatpush2.bf16.msra.mxu0 0
      %777 = vmatprep.subr.bf16.mxu0 0
      %778 = vmatpush2.bf16.msra.mxu0 0
      %779 = vmatprep.subr.bf16.mxu0 0
      %780 = vmatpush2.bf16.msra.mxu0 0
      %781 = vmatprep.subr.bf16.mxu0 0
      %782 = vmatpush2.bf16.msra.mxu0 0
      %783 = vmatprep.subr.bf16.mxu0 0
      %784 = vmatpush2.bf16.msra.mxu0 0
      %785 = vmatprep.subr.bf16.mxu0 0
      %786 = vmatpush2.bf16.msra.mxu0 0
      %787 = vmatprep.subr.bf16.mxu0 0
      %788 = vmatpush2.bf16.msra.mxu0 0
      %789 = vmatprep.subr.bf16.mxu0 0
      %790 = vmatpush2.bf16.msra.mxu0 0
      %791 = vmatprep.mubr.bf16.mxu0 0
      %792 = vmatmul.mubr.bf16.gmra.mxu0 %v707
      %v793 = vpop.f32.mrf.mxu0
      %v794 = vadd.f32 0.0, %v793
      %v795 = vpop.f32.mrf.mxu0
      %v796 = vpop.f32.mrf.mxu0
      %v797 = vpop.f32.mrf.mxu0
      %798 = vdwg.mxu0
      %v799 = vadd.f32 %v689, %v753
      %v800 = vadd.f32 %v690, %v755
      %v801 = vadd.f32 %v691, %v794
      %s802 = scalar_lea.vmem %s0, 20
      %v803 = vld [vmem:[%s802] sm:$0xf]
      %804 = vrot.lane.b32.xlu0 %v260, 108
      %v805 = vpop.permute.xlu0 %804
      %806 = vrot.lane.b32.xlu0 %v261, 108
      %v807 = vpop.permute.xlu0 %806
      %808 = vrot.lane.b32.xlu0 %v262, 108
      %v809 = vpop.permute.xlu0 %808
      %810 = vrot.lane.b32.xlu0 %v263, 108
      %v811 = vpop.permute.xlu0 %810
      %vm812 = vcmask 883712
      %v813 = vsel %vm812, %v805, %v807
      %v814 = vsel %vm812, %v807, %v809
      %v815 = vsel %vm812, %v809, %v811
      %v817 = vsel %vm276, %v803, 0
      %v820 = vsel %vm280, %v813, 0
      %v823 = vsel %vm280, %v814, 0
      %v826 = vsel %vm280, %v815, 0
      %828 = vmatprep.subr.bf16.mxu0 0
      %829 = vmatpush1.bf16.msra.mxu0 0
      %830 = vmatprep.subr.bf16.mxu0 0
      %831 = vmatpush1.bf16.msra.mxu0 0
      %832 = vmatprep.subr.bf16.mxu0 0
      %833 = vmatpush1.bf16.msra.mxu0 0
      %834 = vmatprep.subr.bf16.mxu0 0
      %835 = vmatpush1.bf16.msra.mxu0 0
      %836 = vmatprep.subr.bf16.mxu0 0
      %837 = vmatpush1.bf16.msra.mxu0 0
      %838 = vmatprep.subr.bf16.mxu0 0
      %839 = vmatpush1.bf16.msra.mxu0 0
      %840 = vmatprep.subr.bf16.mxu0 0
      %841 = vmatpush1.bf16.msra.mxu0 0
      %842 = vmatprep.subr.bf16.mxu0 %v823
      %843 = vmatpush1.bf16.msra.mxu0 %v820
      %844 = vmatprep.subr.bf16.mxu0 0
      %845 = vmatpush2.bf16.msra.mxu0 0
      %846 = vmatprep.subr.bf16.mxu0 0
      %847 = vmatpush2.bf16.msra.mxu0 0
      %848 = vmatprep.subr.bf16.mxu0 0
      %849 = vmatpush2.bf16.msra.mxu0 0
      %850 = vmatprep.subr.bf16.mxu0 0
      %851 = vmatpush2.bf16.msra.mxu0 0
      %852 = vmatprep.subr.bf16.mxu0 0
      %853 = vmatpush2.bf16.msra.mxu0 0
      %854 = vmatprep.subr.bf16.mxu0 0
      %855 = vmatpush2.bf16.msra.mxu0 0
      %856 = vmatprep.subr.bf16.mxu0 0
      %857 = vmatpush2.bf16.msra.mxu0 0
      %858 = vmatprep.subr.bf16.mxu0 0
      %859 = vmatpush2.bf16.msra.mxu0 0
      %860 = vmatprep.mubr.bf16.mxu0 0
      %861 = vmatmul.mubr.bf16.gmra.mxu0 %v817
      %v862 = vpop.f32.mrf.mxu0
      %v863 = vadd.f32 0.0, %v862
      %v864 = vpop.f32.mrf.mxu0
      %v865 = vadd.f32 0.0, %v864
      %v866 = vpop.f32.mrf.mxu0
      %v867 = vpop.f32.mrf.mxu0
      %868 = vdwg.mxu0
      %869 = vmatprep.subr.bf16.mxu0 0
      %870 = vmatpush1.bf16.msra.mxu0 0
      %871 = vmatprep.subr.bf16.mxu0 0
      %872 = vmatpush1.bf16.msra.mxu0 0
      %873 = vmatprep.subr.bf16.mxu0 0
      %874 = vmatpush1.bf16.msra.mxu0 0
      %875 = vmatprep.subr.bf16.mxu0 0
      %876 = vmatpush1.bf16.msra.mxu0 0
      %877 = vmatprep.subr.bf16.mxu0 0
      %878 = vmatpush1.bf16.msra.mxu0 0
      %879 = vmatprep.subr.bf16.mxu0 0
      %880 = vmatpush1.bf16.msra.mxu0 0
      %881 = vmatprep.subr.bf16.mxu0 0
      %882 = vmatpush1.bf16.msra.mxu0 0
      %883 = vmatprep.subr.bf16.mxu0 0
      %884 = vmatpush1.bf16.msra.mxu0 %v826
      %885 = vmatprep.subr.bf16.mxu0 0
      %886 = vmatpush2.bf16.msra.mxu0 0
      %887 = vmatprep.subr.bf16.mxu0 0
      %888 = vmatpush2.bf16.msra.mxu0 0
      %889 = vmatprep.subr.bf16.mxu0 0
      %890 = vmatpush2.bf16.msra.mxu0 0
      %891 = vmatprep.subr.bf16.mxu0 0
      %892 = vmatpush2.bf16.msra.mxu0 0
      %893 = vmatprep.subr.bf16.mxu0 0
      %894 = vmatpush2.bf16.msra.mxu0 0
      %895 = vmatprep.subr.bf16.mxu0 0
      %896 = vmatpush2.bf16.msra.mxu0 0
      %897 = vmatprep.subr.bf16.mxu0 0
      %898 = vmatpush2.bf16.msra.mxu0 0
      %899 = vmatprep.subr.bf16.mxu0 0
      %900 = vmatpush2.bf16.msra.mxu0 0
      %901 = vmatprep.mubr.bf16.mxu0 0
      %902 = vmatmul.mubr.bf16.gmra.mxu0 %v817
      %v903 = vpop.f32.mrf.mxu0
      %v904 = vadd.f32 0.0, %v903
      %v905 = vpop.f32.mrf.mxu0
      %v906 = vpop.f32.mrf.mxu0
      %v907 = vpop.f32.mrf.mxu0
      %908 = vdwg.mxu0
      %v909 = vadd.f32 %v799, %v863
      %v910 = vadd.f32 %v800, %v865
      %v911 = vadd.f32 %v801, %v904
      %s912 = scalar_lea.vmem %s0, 24
      %v913 = vld [vmem:[%s912] sm:$0xf]
      %914 = vrot.lane.b32.xlu0 %v260, 92
      %v915 = vpop.permute.xlu0 %914
      %916 = vrot.lane.b32.xlu0 %v261, 92
      %v917 = vpop.permute.xlu0 %916
      %918 = vrot.lane.b32.xlu0 %v262, 92
      %v919 = vpop.permute.xlu0 %918
      %920 = vrot.lane.b32.xlu0 %v263, 92
      %v921 = vpop.permute.xlu0 %920
      %vm922 = vcmask 752640
      %v923 = vsel %vm922, %v915, %v917
      %v924 = vsel %vm922, %v917, %v919
      %v925 = vsel %vm922, %v919, %v921
      %v927 = vsel %vm276, %v913, 0
      %v930 = vsel %vm280, %v923, 0
      %v933 = vsel %vm280, %v924, 0
      %v936 = vsel %vm280, %v925, 0
      %938 = vmatprep.subr.bf16.mxu0 0
      %939 = vmatpush1.bf16.msra.mxu0 0
      %940 = vmatprep.subr.bf16.mxu0 0
      %941 = vmatpush1.bf16.msra.mxu0 0
      %942 = vmatprep.subr.bf16.mxu0 0
      %943 = vmatpush1.bf16.msra.mxu0 0
      %944 = vmatprep.subr.bf16.mxu0 0
      %945 = vmatpush1.bf16.msra.mxu0 0
      %946 = vmatprep.subr.bf16.mxu0 0
      %947 = vmatpush1.bf16.msra.mxu0 0
      %948 = vmatprep.subr.bf16.mxu0 0
      %949 = vmatpush1.bf16.msra.mxu0 0
      %950 = vmatprep.subr.bf16.mxu0 0
      %951 = vmatpush1.bf16.msra.mxu0 0
      %952 = vmatprep.subr.bf16.mxu0 %v933
      %953 = vmatpush1.bf16.msra.mxu0 %v930
      %954 = vmatprep.subr.bf16.mxu0 0
      %955 = vmatpush2.bf16.msra.mxu0 0
      %956 = vmatprep.subr.bf16.mxu0 0
      %957 = vmatpush2.bf16.msra.mxu0 0
      %958 = vmatprep.subr.bf16.mxu0 0
      %959 = vmatpush2.bf16.msra.mxu0 0
      %960 = vmatprep.subr.bf16.mxu0 0
      %961 = vmatpush2.bf16.msra.mxu0 0
      %962 = vmatprep.subr.bf16.mxu0 0
      %963 = vmatpush2.bf16.msra.mxu0 0
      %964 = vmatprep.subr.bf16.mxu0 0
      %965 = vmatpush2.bf16.msra.mxu0 0
      %966 = vmatprep.subr.bf16.mxu0 0
      %967 = vmatpush2.bf16.msra.mxu0 0
      %968 = vmatprep.subr.bf16.mxu0 0
      %969 = vmatpush2.bf16.msra.mxu0 0
      %970 = vmatprep.mubr.bf16.mxu0 0
      %971 = vmatmul.mubr.bf16.gmra.mxu0 %v927
      %v972 = vpop.f32.mrf.mxu0
      %v973 = vadd.f32 0.0, %v972
      %v974 = vpop.f32.mrf.mxu0
      %v975 = vadd.f32 0.0, %v974
      %v976 = vpop.f32.mrf.mxu0
      %v977 = vpop.f32.mrf.mxu0
      %978 = vdwg.mxu0
      %979 = vmatprep.subr.bf16.mxu0 0
      %980 = vmatpush1.bf16.msra.mxu0 0
      %981 = vmatprep.subr.bf16.mxu0 0
      %982 = vmatpush1.bf16.msra.mxu0 0
      %983 = vmatprep.subr.bf16.mxu0 0
      %984 = vmatpush1.bf16.msra.mxu0 0
      %985 = vmatprep.subr.bf16.mxu0 0
      %986 = vmatpush1.bf16.msra.mxu0 0
      %987 = vmatprep.subr.bf16.mxu0 0
      %988 = vmatpush1.bf16.msra.mxu0 0
      %989 = vmatprep.subr.bf16.mxu0 0
      %990 = vmatpush1.bf16.msra.mxu0 0
      %991 = vmatprep.subr.bf16.mxu0 0
      %992 = vmatpush1.bf16.msra.mxu0 0
      %993 = vmatprep.subr.bf16.mxu0 0
      %994 = vmatpush1.bf16.msra.mxu0 %v936
      %995 = vmatprep.subr.bf16.mxu0 0
      %996 = vmatpush2.bf16.msra.mxu0 0
      %997 = vmatprep.subr.bf16.mxu0 0
      %998 = vmatpush2.bf16.msra.mxu0 0
      %999 = vmatprep.subr.bf16.mxu0 0
      %1000 = vmatpush2.bf16.msra.mxu0 0
      %1001 = vmatprep.subr.bf16.mxu0 0
      %1002 = vmatpush2.bf16.msra.mxu0 0
      %1003 = vmatprep.subr.bf16.mxu0 0
      %1004 = vmatpush2.bf16.msra.mxu0 0
      %1005 = vmatprep.subr.bf16.mxu0 0
      %1006 = vmatpush2.bf16.msra.mxu0 0
      %1007 = vmatprep.subr.bf16.mxu0 0
      %1008 = vmatpush2.bf16.msra.mxu0 0
      %1009 = vmatprep.subr.bf16.mxu0 0
      %1010 = vmatpush2.bf16.msra.mxu0 0
      %1011 = vmatprep.mubr.bf16.mxu0 0
      %1012 = vmatmul.mubr.bf16.gmra.mxu0 %v927
      %v1013 = vpop.f32.mrf.mxu0
      %v1014 = vadd.f32 0.0, %v1013
      %v1015 = vpop.f32.mrf.mxu0
      %v1016 = vpop.f32.mrf.mxu0
      %v1017 = vpop.f32.mrf.mxu0
      %1018 = vdwg.mxu0
      %v1019 = vadd.f32 %v909, %v973
      %v1020 = vadd.f32 %v910, %v975
      %v1021 = vadd.f32 %v911, %v1014
      %s1022 = scalar_lea.vmem %s0, 28
      %v1023 = vld [vmem:[%s1022] sm:$0xf]
      %1024 = vrot.lane.b32.xlu0 %v260, 91
      %v1025 = vpop.permute.xlu0 %1024
      %1026 = vrot.lane.b32.xlu0 %v261, 91
      %v1027 = vpop.permute.xlu0 %1026
      %1028 = vrot.lane.b32.xlu0 %v262, 91
      %v1029 = vpop.permute.xlu0 %1028
      %1030 = vrot.lane.b32.xlu0 %v263, 91
      %v1031 = vpop.permute.xlu0 %1030
      %vm1032 = vcmask 744448
      %v1033 = vsel %vm1032, %v1025, %v1027
      %v1034 = vsel %vm1032, %v1027, %v1029
      %v1035 = vsel %vm1032, %v1029, %v1031
      %v1037 = vsel %vm276, %v1023, 0
      %v1040 = vsel %vm280, %v1033, 0
      %v1043 = vsel %vm280, %v1034, 0
      %v1046 = vsel %vm280, %v1035, 0
      %1048 = vmatprep.subr.bf16.mxu0 0
      %1049 = vmatpush1.bf16.msra.mxu0 0
      %1050 = vmatprep.subr.bf16.mxu0 0
      %1051 = vmatpush1.bf16.msra.mxu0 0
      %1052 = vmatprep.subr.bf16.mxu0 0
      %1053 = vmatpush1.bf16.msra.mxu0 0
      %1054 = vmatprep.subr.bf16.mxu0 0
      %1055 = vmatpush1.bf16.msra.mxu0 0
      %1056 = vmatprep.subr.bf16.mxu0 0
      %1057 = vmatpush1.bf16.msra.mxu0 0
      %1058 = vmatprep.subr.bf16.mxu0 0
      %1059 = vmatpush1.bf16.msra.mxu0 0
      %1060 = vmatprep.subr.bf16.mxu0 0
      %1061 = vmatpush1.bf16.msra.mxu0 0
      %1062 = vmatprep.subr.bf16.mxu0 %v1043
      %1063 = vmatpush1.bf16.msra.mxu0 %v1040
      %1064 = vmatprep.subr.bf16.mxu0 0
      %1065 = vmatpush2.bf16.msra.mxu0 0
      %1066 = vmatprep.subr.bf16.mxu0 0
      %1067 = vmatpush2.bf16.msra.mxu0 0
      %1068 = vmatprep.subr.bf16.mxu0 0
      %1069 = vmatpush2.bf16.msra.mxu0 0
      %1070 = vmatprep.subr.bf16.mxu0 0
      %1071 = vmatpush2.bf16.msra.mxu0 0
      %1072 = vmatprep.subr.bf16.mxu0 0
      %1073 = vmatpush2.bf16.msra.mxu0 0
      %1074 = vmatprep.subr.bf16.mxu0 0
      %1075 = vmatpush2.bf16.msra.mxu0 0
      %1076 = vmatprep.subr.bf16.mxu0 0
      %1077 = vmatpush2.bf16.msra.mxu0 0
      %1078 = vmatprep.subr.bf16.mxu0 0
      %1079 = vmatpush2.bf16.msra.mxu0 0
      %1080 = vmatprep.mubr.bf16.mxu0 0
      %1081 = vmatmul.mubr.bf16.gmra.mxu0 %v1037
      %v1082 = vpop.f32.mrf.mxu0
      %v1083 = vadd.f32 0.0, %v1082
      %v1084 = vpop.f32.mrf.mxu0
      %v1085 = vadd.f32 0.0, %v1084
      %v1086 = vpop.f32.mrf.mxu0
      %v1087 = vpop.f32.mrf.mxu0
      %1088 = vdwg.mxu0
      %1089 = vmatprep.subr.bf16.mxu0 0
      %1090 = vmatpush1.bf16.msra.mxu0 0
      %1091 = vmatprep.subr.bf16.mxu0 0
      %1092 = vmatpush1.bf16.msra.mxu0 0
      %1093 = vmatprep.subr.bf16.mxu0 0
      %1094 = vmatpush1.bf16.msra.mxu0 0
      %1095 = vmatprep.subr.bf16.mxu0 0
      %1096 = vmatpush1.bf16.msra.mxu0 0
      %1097 = vmatprep.subr.bf16.mxu0 0
      %1098 = vmatpush1.bf16.msra.mxu0 0
      %1099 = vmatprep.subr.bf16.mxu0 0
      %1100 = vmatpush1.bf16.msra.mxu0 0
      %1101 = vmatprep.subr.bf16.mxu0 0
      %1102 = vmatpush1.bf16.msra.mxu0 0
      %1103 = vmatprep.subr.bf16.mxu0 0
      %1104 = vmatpush1.bf16.msra.mxu0 %v1046
      %1105 = vmatprep.subr.bf16.mxu0 0
      %1106 = vmatpush2.bf16.msra.mxu0 0
      %1107 = vmatprep.subr.bf16.mxu0 0
      %1108 = vmatpush2.bf16.msra.mxu0 0
      %1109 = vmatprep.subr.bf16.mxu0 0
      %1110 = vmatpush2.bf16.msra.mxu0 0
      %1111 = vmatprep.subr.bf16.mxu0 0
      %1112 = vmatpush2.bf16.msra.mxu0 0
      %1113 = vmatprep.subr.bf16.mxu0 0
      %1114 = vmatpush2.bf16.msra.mxu0 0
      %1115 = vmatprep.subr.bf16.mxu0 0
      %1116 = vmatpush2.bf16.msra.mxu0 0
      %1117 = vmatprep.subr.bf16.mxu0 0
      %1118 = vmatpush2.bf16.msra.mxu0 0
      %1119 = vmatprep.subr.bf16.mxu0 0
      %1120 = vmatpush2.bf16.msra.mxu0 0
      %1121 = vmatprep.mubr.bf16.mxu0 0
      %1122 = vmatmul.mubr.bf16.gmra.mxu0 %v1037
      %v1123 = vpop.f32.mrf.mxu0
      %v1124 = vadd.f32 0.0, %v1123
      %v1125 = vpop.f32.mrf.mxu0
      %v1126 = vpop.f32.mrf.mxu0
      %v1127 = vpop.f32.mrf.mxu0
      %1128 = vdwg.mxu0
      %v1129 = vadd.f32 %v1019, %v1083
      %v1130 = vadd.f32 %v1020, %v1085
      %v1131 = vadd.f32 %v1021, %v1124
      %s1132 = scalar_lea.vmem %s0, 32
      %v1133 = vld [vmem:[%s1132] sm:$0xf]
      %1134 = vrot.lane.b32.xlu0 %v260, 90
      %v1135 = vpop.permute.xlu0 %1134
      %1136 = vrot.lane.b32.xlu0 %v261, 90
      %v1137 = vpop.permute.xlu0 %1136
      %1138 = vrot.lane.b32.xlu0 %v262, 90
      %v1139 = vpop.permute.xlu0 %1138
      %1140 = vrot.lane.b32.xlu0 %v263, 90
      %v1141 = vpop.permute.xlu0 %1140
      %vm1142 = vcmask 736256
      %v1143 = vsel %vm1142, %v1135, %v1137
      %v1144 = vsel %vm1142, %v1137, %v1139
      %v1145 = vsel %vm1142, %v1139, %v1141
      %v1147 = vsel %vm276, %v1133, 0
      %v1150 = vsel %vm280, %v1143, 0
      %v1153 = vsel %vm280, %v1144, 0
      %v1156 = vsel %vm280, %v1145, 0
      %1158 = vmatprep.subr.bf16.mxu0 0
      %1159 = vmatpush1.bf16.msra.mxu0 0
      %1160 = vmatprep.subr.bf16.mxu0 0
      %1161 = vmatpush1.bf16.msra.mxu0 0
      %1162 = vmatprep.subr.bf16.mxu0 0
      %1163 = vmatpush1.bf16.msra.mxu0 0
      %1164 = vmatprep.subr.bf16.mxu0 0
      %1165 = vmatpush1.bf16.msra.mxu0 0
      %1166 = vmatprep.subr.bf16.mxu0 0
      %1167 = vmatpush1.bf16.msra.mxu0 0
      %1168 = vmatprep.subr.bf16.mxu0 0
      %1169 = vmatpush1.bf16.msra.mxu0 0
      %1170 = vmatprep.subr.bf16.mxu0 0
      %1171 = vmatpush1.bf16.msra.mxu0 0
      %1172 = vmatprep.subr.bf16.mxu0 %v1153
      %1173 = vmatpush1.bf16.msra.mxu0 %v1150
      %1174 = vmatprep.subr.bf16.mxu0 0
      %1175 = vmatpush2.bf16.msra.mxu0 0
      %1176 = vmatprep.subr.bf16.mxu0 0
      %1177 = vmatpush2.bf16.msra.mxu0 0
      %1178 = vmatprep.subr.bf16.mxu0 0
      %1179 = vmatpush2.bf16.msra.mxu0 0
      %1180 = vmatprep.subr.bf16.mxu0 0
      %1181 = vmatpush2.bf16.msra.mxu0 0
      %1182 = vmatprep.subr.bf16.mxu0 0
      %1183 = vmatpush2.bf16.msra.mxu0 0
      %1184 = vmatprep.subr.bf16.mxu0 0
      %1185 = vmatpush2.bf16.msra.mxu0 0
      %1186 = vmatprep.subr.bf16.mxu0 0
      %1187 = vmatpush2.bf16.msra.mxu0 0
      %1188 = vmatprep.subr.bf16.mxu0 0
      %1189 = vmatpush2.bf16.msra.mxu0 0
      %1190 = vmatprep.mubr.bf16.mxu0 0
      %1191 = vmatmul.mubr.bf16.gmra.mxu0 %v1147
      %v1192 = vpop.f32.mrf.mxu0
      %v1193 = vadd.f32 0.0, %v1192
      %v1194 = vpop.f32.mrf.mxu0
      %v1195 = vadd.f32 0.0, %v1194
      %v1196 = vpop.f32.mrf.mxu0
      %v1197 = vpop.f32.mrf.mxu0
      %1198 = vdwg.mxu0
      %1199 = vmatprep.subr.bf16.mxu0 0
      %1200 = vmatpush1.bf16.msra.mxu0 0
      %1201 = vmatprep.subr.bf16.mxu0 0
      %1202 = vmatpush1.bf16.msra.mxu0 0
      %1203 = vmatprep.subr.bf16.mxu0 0
      %1204 = vmatpush1.bf16.msra.mxu0 0
      %1205 = vmatprep.subr.bf16.mxu0 0
      %1206 = vmatpush1.bf16.msra.mxu0 0
      %1207 = vmatprep.subr.bf16.mxu0 0
      %1208 = vmatpush1.bf16.msra.mxu0 0
      %1209 = vmatprep.subr.bf16.mxu0 0
      %1210 = vmatpush1.bf16.msra.mxu0 0
      %1211 = vmatprep.subr.bf16.mxu0 0
      %1212 = vmatpush1.bf16.msra.mxu0 0
      %1213 = vmatprep.subr.bf16.mxu0 0
      %1214 = vmatpush1.bf16.msra.mxu0 %v1156
      %1215 = vmatprep.subr.bf16.mxu0 0
      %1216 = vmatpush2.bf16.msra.mxu0 0
      %1217 = vmatprep.subr.bf16.mxu0 0
      %1218 = vmatpush2.bf16.msra.mxu0 0
      %1219 = vmatprep.subr.bf16.mxu0 0
      %1220 = vmatpush2.bf16.msra.mxu0 0
      %1221 = vmatprep.subr.bf16.mxu0 0
      %1222 = vmatpush2.bf16.msra.mxu0 0
      %1223 = vmatprep.subr.bf16.mxu0 0
      %1224 = vmatpush2.bf16.msra.mxu0 0
      %1225 = vmatprep.subr.bf16.mxu0 0
      %1226 = vmatpush2.bf16.msra.mxu0 0
      %1227 = vmatprep.subr.bf16.mxu0 0
      %1228 = vmatpush2.bf16.msra.mxu0 0
      %1229 = vmatprep.subr.bf16.mxu0 0
      %1230 = vmatpush2.bf16.msra.mxu0 0
      %1231 = vmatprep.mubr.bf16.mxu0 0
      %1232 = vmatmul.mubr.bf16.gmra.mxu0 %v1147
      %v1233 = vpop.f32.mrf.mxu0
      %v1234 = vadd.f32 0.0, %v1233
      %v1235 = vpop.f32.mrf.mxu0
      %v1236 = vpop.f32.mrf.mxu0
      %v1237 = vpop.f32.mrf.mxu0
      %1238 = vdwg.mxu0
      %v1239 = vadd.f32 %v1129, %v1193
      %v1240 = vadd.f32 %v1130, %v1195
      %v1241 = vadd.f32 %v1131, %v1234
      %v1242 = vld [vmem:[%s1] sm:$0x7]
      %v1244 = vlaneseq
      %v1245 = vshrl.u32 %v1244, 7
      %v1246 = vsub.s32 0, %v1245
      %v1247 = vrot.slane %v1242, %v1246
      %v1248 = vlaneseq
      %v1249 = vshrl.u32 %v1248, 7
      %v1250 = vsub.s32 1, %v1249
      %v1251 = vrot.slane %v1242, %v1250
      %v1252 = vlaneseq
      %v1253 = vshrl.u32 %v1252, 7
      %v1254 = vsub.s32 2, %v1253
      %v1255 = vrot.slane %v1242, %v1254
      %v1259 = vmul.f32 %v1239, %v1247
      %v1260 = vmul.f32 %v1240, %v1251
      %v1261 = vmul.f32 %v1241, %v1255
      %v1262 = vadd.f32 %v1259, %v1260
      %v1263 = vadd.f32 %v1262, %v1261
      %1264 = vadd.xlane.f32.xlu0 %v1263
      %v1265 = vpop.xlane.xlu0 %1264
      %vm1266 = vcmask 7168
      %1267 = vst.msk [vmem:[%s241] sm:$0xff] %vm1266, %v1265
      %v1268 = vmul.f32 %v1259, %v1239
      %v1269 = vmul.f32 %v1260, %v1240
      %v1270 = vmul.f32 %v1261, %v1241
      %v1271 = vadd.f32 %v1268, %v1269
      %v1272 = vadd.f32 %v1271, %v1270
      %1273 = vadd.xlane.f32.xlu0 %v1272
      %v1274 = vpop.xlane.xlu0 %1273
      %1275 = vst.msk [vmem:[%s245] sm:$0xff] %vm1266, %v1274
      %v1276 = vpack.c.bf16 %v1239, %v1239
      %v1277 = vpack.c.bf16 %v1240, %v1240
      %v1278 = vpack.c.bf16 %v1241, %v1241
      %v1282 = vunpack.c.l.b16 %v1276
      %v1283 = vunpack.c.l.b16 %v1277
      %v1284 = vunpack.c.l.b16 %v1278
      %v1285 = vpack.c.b16 %v1283, %v1282
      %v1286 = vpack.c.b16 %v1284, %v1284
      %1289 = vst [vmem:[%s237] sm:$0xff] %v1285
      %1290 = vst [vmem:[%s237 + $0x8] sm:$0xf] %v1286
      %p1291 = scmp.lt.s32.totalorder %s17, 1
      %s1292 = scalar_select %p1291, %s17, 1
      %s1293 = smul.addr %s1292, 3
      %s1294 = smul.addr %s1293, 4
      %s1295 = scalar_lea.vmem %s3, %s1294
      %p1296 = scmp.lt.s32.totalorder %s17, 1
      %s1297 = scalar_select %p1296, %s17, 1
      %s1298 = smul.addr %s1297, 8
      %s1299 = scalar_lea.vmem %s4, %s1298
      %p1300 = scmp.lt.s32.totalorder %s17, 1
      %s1301 = scalar_select %p1300, %s17, 1
      %s1302 = smul.addr %s1301, 8
      %s1303 = scalar_lea.vmem %s5, %s1302
      // Predicated region
      $region33: #{conv_bn_forward.2} parent=31 // pred_check
        %p1304 = pneg %p103
      $region34: #{conv_bn_forward.2} parent=31 // pred_check_branch
        %1306 = sbr.rel (%p1304) target = $region36
      $region35: #{conv_bn_forward.2} parent=31 // pred_region
        _
      $region36: #{conv_bn_forward.2} parent=31 // pred_fallthru
        _
      // Predicated region
      $region37: #{conv_bn_forward.2} parent=31 // pred_check
        %p1307 = pneg %p129
      $region38: #{conv_bn_forward.2} parent=31 // pred_check_branch
        %1309 = sbr.rel (%p1307) target = $region40
      $region39: #{conv_bn_forward.2} parent=31 // pred_region
        _
      $region40: #{conv_bn_forward.2} parent=31 // pred_fallthru
        _
      // Predicated region
      $region41: #{conv_bn_forward.2} parent=31 // pred_check
        %p1310 = pneg %p155
      $region42: #{conv_bn_forward.2} parent=31 // pred_check_branch
        %1312 = sbr.rel (%p1310) target = $region44
      $region43: #{conv_bn_forward.2} parent=31 // pred_region
        _
      $region44: #{conv_bn_forward.2} parent=31 // pred_fallthru
        _
    $region32: #{conv_bn_forward.2} parent=5 // pred_fallthru
      _
    %p1313 = scmp.le.s32.totalorder 2, %s12
    // Predicated region
    $region45: #{conv_bn_forward.2} parent=5 // pred_check
      %p1314 = pneg %p1313
    $region46: #{conv_bn_forward.2} parent=5 // pred_check_branch
      %1316 = sbr.rel (%p1314) target = $region48
    $region47: #{conv_bn_forward.2} parent=5 // pred_region
      %s1317 = ssub.s32 %s12, 2
      // Predicated region
      $region49: #{conv_bn_forward.2} parent=47 // pred_check
        %p1318 = pneg %p109
      $region50: #{conv_bn_forward.2} parent=47 // pred_check_branch
        %1320 = sbr.rel (%p1318) target = $region52
      $region51: #{conv_bn_forward.2} parent=47 // pred_region
        %p1321 = scmp.lt.s32.totalorder %s18, 1
        %s1322 = scalar_select %p1321, %s18, 1
        %s1323 = smul.addr %s1322, 3
        %s1324 = smul.addr %s1323, 4
        %s1325 = scalar_lea.vmem %s3, %s1324
      $region52: #{conv_bn_forward.2} parent=47 // pred_fallthru
        _
      // Predicated region
      $region53: #{conv_bn_forward.2} parent=47 // pred_check
        %p1326 = pneg %p135
      $region54: #{conv_bn_forward.2} parent=47 // pred_check_branch
        %1328 = sbr.rel (%p1326) target = $region56
      $region55: #{conv_bn_forward.2} parent=47 // pred_region
        %p1329 = scmp.lt.s32.totalorder %s18, 1
        %s1330 = scalar_select %p1329, %s18, 1
        %s1331 = smul.addr %s1330, 8
        %s1332 = scalar_lea.vmem %s4, %s1331
      $region56: #{conv_bn_forward.2} parent=47 // pred_fallthru
        _
      // Predicated region
      $region57: #{conv_bn_forward.2} parent=47 // pred_check
        %p1333 = pneg %p161
      $region58: #{conv_bn_forward.2} parent=47 // pred_check_branch
        %1335 = sbr.rel (%p1333) target = $region60
      $region59: #{conv_bn_forward.2} parent=47 // pred_region
        %p1336 = scmp.lt.s32.totalorder %s18, 1
        %s1337 = scalar_select %p1336, %s18, 1
        %s1338 = smul.addr %s1337, 8
        %s1339 = scalar_lea.vmem %s5, %s1338
      $region60: #{conv_bn_forward.2} parent=47 // pred_fallthru
        _
    $region48: #{conv_bn_forward.2} parent=5 // pred_fallthru
      _
  $region6: #{conv_bn_forward.2} parent=0 // loop_footer
    %s16 = sadd.s32 1, %s12
  $region7: #{conv_bn_forward.2} parent=0 // loop_footer_branch
    %11 = sbr.rel target = $region3
  $region8: #{conv_bn_forward.2} parent=0 // loop_exit
    _

</llo_original>
